<compile_context>
chip_gen: v7x
topology: tpu7x:2x2x1
jax: 0.10.0
libtpu: 0.0.40
codegen_flags: <defaults>
</compile_context>

<pallas_src>
import functools
import math

import jax
import jax.numpy as jnp
from jax.experimental import pallas as pl
from jax.experimental.pallas import tpu as pltpu


# ---------------------------------------------------------------------------
# 1. Embedding gather: one kernel invocation, manual overlapped row DMAs
# ---------------------------------------------------------------------------
def _embed_gather_kernel(ids_ref, table_ref, out_ref, sem, *, n_rows):
    # ids_ref  : SMEM (N,) scalar-prefetched token ids (time-major flattened)
    # table_ref: HBM (vocab, E) -- stays in HBM, rows are DMA'd on demand
    # out_ref  : VMEM (N, E)
    copies = []
    for i in range(n_rows):        # static unroll; chunk via the grid for big N
        cp = pltpu.make_async_copy(table_ref.at[ids_ref[i]],
                                   out_ref.at[i], sem.at[i])
        cp.start()
        copies.append(cp)
    for cp in copies:
        cp.wait()


def embedding_lookup(ids_flat, table):
    """ids_flat: (N,) int32 token ids -> (N, E) gathered embedding rows."""
    n = ids_flat.shape[0]
    emb = table.shape[1]
    return pl.pallas_call(
        functools.partial(_embed_gather_kernel, n_rows=n),
        out_shape=jax.ShapeDtypeStruct((n, emb), table.dtype),
        grid_spec=pltpu.PrefetchScalarGridSpec(
            num_scalar_prefetch=1,
            grid=(1,),
            in_specs=[pl.BlockSpec(memory_space=pl.ANY)],   # table stays in HBM
            out_specs=pl.BlockSpec((n, emb), lambda i, ids: (0, 0)),
            scratch_shapes=[pltpu.SemaphoreType.DMA((n,))],
        ),
        compiler_params=pltpu.CompilerParams(
            dimension_semantics=("arbitrary",)),
    )(ids_flat, table)


# ---------------------------------------------------------------------------
# 2. Fused bidirectional LSTM layer (whole sequence inside one kernel)
#
# Fused lane layout (G = 8H gate lanes): [i_f i_b | f_f f_b | g_f g_b | o_f o_b]
# Carried state h, c: (B, 2H) laid out [fwd | bwd], so each 2H-wide gate slab
# lines up elementwise with the state.
# ---------------------------------------------------------------------------
def _input_projection(x_ref, wih_ref, b_ref, gates_scr):
    """Hoisted x @ W_ih + b for all timesteps and both directions (one matmul)."""
    x_b16 = x_ref[...].astype(jnp.bfloat16)                       # (T*B, In)
    gates_scr[...] = (
        jnp.dot(x_b16, wih_ref[...], preferred_element_type=jnp.float32)
        + b_ref[...])                                             # (T*B, 8H) f32


def _bilstm_recurrence(gates_scr, whh, seq, batch, hidden,
                       hf_scr=None, hb_scr=None):
    """Runs the fused fwd+bwd recurrence; returns final (h, c), each (B, 2H) f32."""
    two_h = 2 * hidden
    lane = jax.lax.broadcasted_iota(jnp.int32, (batch, 8 * hidden), 1)
    fwd_mask = ((lane // hidden) % 2) == 0        # True on forward-direction lanes

    h = jnp.zeros((batch, two_h), jnp.float32)
    c = jnp.zeros((batch, two_h), jnp.float32)

    # TODO(synk): for long sequences switch this static unroll to
    # lax.fori_loop(..., unroll=k) or a T-chunk grid with gates staged from HBM.
    for s in range(seq):
        tb = seq - 1 - s                          # timestep consumed by bwd dir
        g_f = gates_scr[s * batch:(s + 1) * batch, :]
        g_b = gates_scr[tb * batch:(tb + 1) * batch, :]
        gates = jnp.where(fwd_mask, g_f, g_b) + jnp.dot(
            h.astype(jnp.bfloat16), whh, preferred_element_type=jnp.float32)
        i_g = jax.nn.sigmoid(gates[:, 0 * two_h:1 * two_h])
        f_g = jax.nn.sigmoid(gates[:, 1 * two_h:2 * two_h])
        g_g = jnp.tanh(gates[:, 2 * two_h:3 * two_h])
        o_g = jax.nn.sigmoid(gates[:, 3 * two_h:4 * two_h])
        c = f_g * c + i_g * g_g
        h = o_g * jnp.tanh(c)
        if hf_scr is not None:
            hf_scr[s] = h[:, :hidden]             # fwd hidden at time s
            hb_scr[tb] = h[:, hidden:]            # bwd hidden at time tb
    return h, c


def _bilstm_seq_kernel(x_ref, wih_ref, whh_ref, b_ref, hseq_ref,
                       gates_scr, hf_scr, hb_scr, *, seq, batch, hidden):
    _input_projection(x_ref, wih_ref, b_ref, gates_scr)
    _bilstm_recurrence(gates_scr, whh_ref[...], seq, batch, hidden,
                       hf_scr=hf_scr, hb_scr=hb_scr)
    # Concatenated next-layer input, written once (no HBM reverse/concat pass).
    hseq_ref[:, :, 0:hidden] = hf_scr[...].astype(hseq_ref.dtype)
    hseq_ref[:, :, hidden:2 * hidden] = hb_scr[...].astype(hseq_ref.dtype)


def _bilstm_head_kernel(x_ref, wih_ref, whh_ref, b_ref, fcw_ref, fcb_ref,
                        out_ref, gates_scr, *, seq, batch, hidden):
    _input_projection(x_ref, wih_ref, b_ref, gates_scr)
    h_fin, _ = _bilstm_recurrence(gates_scr, whh_ref[...], seq, batch, hidden)
    # h_fin == cat(final fwd hidden, final bwd hidden) == cat(hidden[-2], hidden[-1])
    out_ref[...] = (
        jnp.dot(h_fin, fcw_ref[...], preferred_element_type=jnp.float32)
        + fcb_ref[...]).astype(out_ref.dtype)


def bilstm_layer_seq(x2, wih, whh, b, *, seq, batch, hidden):
    """x2: (T*B, In) time-major. Returns (T, B, 2H) concatenated hidden sequence."""
    in_dim = x2.shape[1]
    g = 8 * hidden
    kernel = functools.partial(_bilstm_seq_kernel,
                               seq=seq, batch=batch, hidden=hidden)
    cost = pl.CostEstimate(
        flops=2 * seq * batch * (in_dim + 2 * hidden) * g,
        transcendentals=6 * seq * batch * 2 * hidden,
        bytes_accessed=4 * (x2.size + seq * batch * 2 * hidden + b.size)
        + 2 * (wih.size + whh.size))
    return pl.pallas_call(
        kernel,
        out_shape=jax.ShapeDtypeStruct((seq, batch, 2 * hidden), x2.dtype),
        grid_spec=pltpu.PrefetchScalarGridSpec(
            num_scalar_prefetch=0,
            grid=(1,),
            in_specs=[
                pl.BlockSpec((seq * batch, in_dim), lambda i: (0, 0)),
                pl.BlockSpec((in_dim, g), lambda i: (0, 0)),
                pl.BlockSpec((2 * hidden, g), lambda i: (0, 0)),
                pl.BlockSpec((1, g), lambda i: (0, 0)),
            ],
            out_specs=pl.BlockSpec((seq, batch, 2 * hidden),
                                   lambda i: (0, 0, 0)),
            scratch_shapes=[
                pltpu.VMEM((seq * batch, g), jnp.float32),      # hoisted gates
                pltpu.VMEM((seq, batch, hidden), jnp.float32),  # fwd h sequence
                pltpu.VMEM((seq, batch, hidden), jnp.float32),  # bwd h sequence
            ],
        ),
        compiler_params=pltpu.CompilerParams(
            dimension_semantics=("arbitrary",)),
        cost_estimate=cost,
    )(x2, wih, whh, b)


def bilstm_layer_head(x2, wih, whh, b, fc_w, fc_b, *, seq, batch, hidden):
    """Last BiLSTM layer fused with the fc head: returns (B, num_classes) logits."""
    in_dim = x2.shape[1]
    g = 8 * hidden
    n_cls = fc_w.shape[1]
    kernel = functools.partial(_bilstm_head_kernel,
                               seq=seq, batch=batch, hidden=hidden)
    return pl.pallas_call(
        kernel,
        out_shape=jax.ShapeDtypeStruct((batch, n_cls), x2.dtype),
        grid_spec=pltpu.PrefetchScalarGridSpec(
            num_scalar_prefetch=0,
            grid=(1,),
            in_specs=[
                pl.BlockSpec((seq * batch, in_dim), lambda i: (0, 0)),
                pl.BlockSpec((in_dim, g), lambda i: (0, 0)),
                pl.BlockSpec((2 * hidden, g), lambda i: (0, 0)),
                pl.BlockSpec((1, g), lambda i: (0, 0)),
                pl.BlockSpec((2 * hidden, n_cls), lambda i: (0, 0)),
                pl.BlockSpec((1, n_cls), lambda i: (0, 0)),
            ],
            out_specs=pl.BlockSpec((batch, n_cls), lambda i: (0, 0)),
            scratch_shapes=[pltpu.VMEM((seq * batch, g), jnp.float32)],
        ),
        compiler_params=pltpu.CompilerParams(
            dimension_semantics=("arbitrary",)),
    )(x2, wih, whh, b, fc_w, fc_b)


# ---------------------------------------------------------------------------
# Parameter packing: fuse the two directions into MXU-friendly weights
# ---------------------------------------------------------------------------
def _interleave_gates(a_f, a_b, hid):
    """(..., 4H) fwd & bwd -> (..., 8H) laid out [i_f i_b f_f f_b g_f g_b o_f o_b]."""
    lead = a_f.shape[:-1]
    af = a_f.reshape(lead + (4, hid))
    ab = a_b.reshape(lead + (4, hid))
    return jnp.concatenate([af, ab], axis=-1).reshape(lead + (8 * hid,))


def _pack_bilstm(fwd_p, bwd_p, hid):
    (wih_f, whh_f, b_f) = fwd_p
    (wih_b, whh_b, b_b) = bwd_p
    wih = _interleave_gates(wih_f, wih_b, hid).astype(jnp.bfloat16)   # (In, 8H)
    zero = jnp.zeros_like(whh_f)
    whh = jnp.concatenate(
        [_interleave_gates(whh_f, zero, hid),       # rows 0:H   drive fwd lanes
         _interleave_gates(zero, whh_b, hid)],      # rows H:2H  drive bwd lanes
        axis=0).astype(jnp.bfloat16)                                  # (2H, 8H)
    b = _interleave_gates(b_f, b_b, hid).reshape(1, 8 * hid)          # f32
    return wih, whh, b


# ---------------------------------------------------------------------------
# Full TextLSTM forward
# ---------------------------------------------------------------------------
def text_lstm_forward(params, text):
    """text: (B, T) int32 token ids -> (B, 2) logits."""
    batch, seq = text.shape
    table = params["embed"]
    hid = params["lstm"][0][0][1].shape[0]

    # time-major flat ids: row r = t*B + b -> matches the kernels' row blocks.
    ids_tm = jnp.transpose(text).reshape(-1).astype(jnp.int32)
    x2 = embedding_lookup(ids_tm, table)                  # (T*B, E)

    n_layers = len(params["lstm"])
    out = None
    for li, (fwd_p, bwd_p) in enumerate(params["lstm"]):
        wih, whh, b = _pack_bilstm(fwd_p, bwd_p, hid)
        if li + 1 < n_layers:
            hseq = bilstm_layer_seq(x2, wih, whh, b,
                                    seq=seq, batch=batch, hidden=hid)
            # TODO(synk): nn.LSTM inter-layer dropout (training only) omitted.
            x2 = hseq.reshape(seq * batch, 2 * hid)       # free row-major reshape
        else:
            out = bilstm_layer_head(x2, wih, whh, b,
                                    params["fc_w"],
                                    params["fc_b"].reshape(1, -1),
                                    seq=seq, batch=batch, hidden=hid)
    return out


# ---------------------------------------------------------------------------
# Pure-JAX f32 reference (mirrors the PyTorch forward)
# ---------------------------------------------------------------------------
def text_lstm_ref(params, text):
    table = params["embed"]
    x = table[text]                                      # (B, T, E)
    x_tm = jnp.transpose(x, (1, 0, 2))                   # (T, B, E)
    hid = params["lstm"][0][0][1].shape[0]

    def run_direction(x_seq, w_ih, w_hh, b):
        bsz = x_seq.shape[1]

        def step(carry, x_t):
            h, c = carry
            gates = x_t @ w_ih + h @ w_hh + b
            i = jax.nn.sigmoid(gates[:, 0 * hid:1 * hid])
            f = jax.nn.sigmoid(gates[:, 1 * hid:2 * hid])
            g = jnp.tanh(gates[:, 2 * hid:3 * hid])
            o = jax.nn.sigmoid(gates[:, 3 * hid:4 * hid])
            c = f * c + i * g
            h = o * jnp.tanh(c)
            return (h, c), h

        init = (jnp.zeros((bsz, hid), jnp.float32),
                jnp.zeros((bsz, hid), jnp.float32))
        (h_last, _), h_seq = jax.lax.scan(step, init, x_seq)
        return h_seq, h_last

    h_fwd_last = h_bwd_last = None
    for (fwd_p, bwd_p) in params["lstm"]:
        h_fwd_seq, h_fwd_last = run_direction(x_tm, *fwd_p)
        h_bwd_seq, h_bwd_last = run_direction(x_tm[::-1], *bwd_p)
        x_tm = jnp.concatenate([h_fwd_seq, h_bwd_seq[::-1]], axis=-1)

    hidden_cat = jnp.concatenate([h_fwd_last, h_bwd_last], axis=-1)
    return hidden_cat @ params["fc_w"] + params["fc_b"]


# ---------------------------------------------------------------------------
# Parameter init (same convention for kernel and reference)
# ---------------------------------------------------------------------------
def init_params(key, vocab, emb_dim, hid, num_layers, num_classes=2):
    k_embed, k_lstm, k_fc = jax.random.split(key, 3)
    params = {"embed": 0.1 * jax.random.normal(k_embed, (vocab, emb_dim),
                                               jnp.float32)}
    bound = 1.0 / math.sqrt(hid)
    lstm = []
    in_dim = emb_dim
    for layer in range(num_layers):
        dirs = []
        for d in range(2):  # forward, backward
            kk = jax.random.fold_in(k_lstm, layer * 2 + d)
            k1, k2, k3 = jax.random.split(kk, 3)
            w_ih = jax.random.uniform(k1, (in_dim, 4 * hid), jnp.float32,
                                      -bound, bound)
            w_hh = jax.random.uniform(k2, (hid, 4 * hid), jnp.float32,
                                      -bound, bound)
            b = jax.random.uniform(k3, (4 * hid,), jnp.float32, -bound, bound)
            dirs.append((w_ih, w_hh, b))
        lstm.append(tuple(dirs))
        in_dim = 2 * hid
    params["lstm"] = lstm
    k1, k2 = jax.random.split(k_fc)
    params["fc_w"] = jax.random.uniform(k1, (2 * hid, num_classes), jnp.float32,
                                        -bound, bound)
    params["fc_b"] = jax.random.uniform(k2, (num_classes,), jnp.float32,
                                        -bound, bound)
    return params


if __name__ == "__main__":
    key = jax.random.PRNGKey(0)
    k_params, k_text = jax.random.split(key)

    B, T = 2, 8
    VOCAB, EMB, HID, LAYERS = 50, 32, 32, 2

    params = init_params(k_params, VOCAB, EMB, HID, LAYERS)
    text = jax.random.randint(k_text, (B, T), 0, VOCAB, dtype=jnp.int32)

    out = text_lstm_forward(params, text)
    out = jax.block_until_ready(out)

    ref = text_lstm_ref(params, text)
    assert out.shape == (B, 2), out.shape
    max_err = float(jnp.max(jnp.abs(out - ref)))
    # Tolerance accounts for bf16 MXU operands in the kernel vs the f32 reference.
    assert jnp.allclose(out, ref, atol=2e-2, rtol=2e-2), max_err
    print("KERNEL_OK")
</pallas_src>

<mosaic_0001>
module attributes {stable_mosaic.version = 11 : i64} {
  func.func @_embed_gather_kernel(%arg0: i32, %arg1: memref<16xi32, #tpu.memory_space<smem>>, %arg2: memref<50x32xf32, #tpu.memory_space<any>>, %arg3: memref<16x32xf32, #tpu.memory_space<vmem>>, %arg4: memref<16x!tpu.dma_semaphore, #tpu.memory_space<semaphore_mem>>) attributes {dimension_semantics = [#tpu.dimension_semantics<arbitrary>], iteration_bounds = array<i64: 1>, scalar_prefetch = 1 : i64, scratch_operands = 1 : i64, tpu.core_type = #tpu.core_type<tc>, window_params = [{}, {pipeline_mode = #tpu.pipeline_mode<synchronous>, transform_indices = @transform_1, window_bounds = array<i64: 16, 32>}]} {
    %c0 = arith.constant 0 : index
    %0 = memref.load %arg1[%c0] : memref<16xi32, #tpu.memory_space<smem>>
    %c0_i32 = arith.constant 0 : i32
    %c0_i32_0 = arith.constant 0 : i32
    %c0_i32_1 = arith.constant 0 : i32
    %1 = tpu.memref_slice %arg2[%0, %c0_i32_1] : memref<50x32xf32, #tpu.memory_space<any>> -> memref<1x32xf32, #tpu.memory_space<any>>
    %2 = tpu.memref_squeeze %1 : memref<1x32xf32, #tpu.memory_space<any>> -> memref<32xf32, #tpu.memory_space<any>>
    %c0_i32_2 = arith.constant 0 : i32
    %3 = tpu.memref_slice %arg3[%c0_i32, %c0_i32_2] : memref<16x32xf32, #tpu.memory_space<vmem>> -> memref<1x32xf32, #tpu.memory_space<vmem>>
    %4 = tpu.memref_squeeze %3 : memref<1x32xf32, #tpu.memory_space<vmem>> -> memref<32xf32, #tpu.memory_space<vmem>>
    %5 = tpu.memref_slice %arg4[%c0_i32_0] : memref<16x!tpu.dma_semaphore, #tpu.memory_space<semaphore_mem>> -> memref<1x!tpu.dma_semaphore, #tpu.memory_space<semaphore_mem>>
    %6 = tpu.memref_squeeze %5 : memref<1x!tpu.dma_semaphore, #tpu.memory_space<semaphore_mem>> -> memref<!tpu.dma_semaphore, #tpu.memory_space<semaphore_mem>>
    tpu.enqueue_dma source(%2 : memref<32xf32, #tpu.memory_space<any>>) target(%4 : memref<32xf32, #tpu.memory_space<vmem>>) target_semaphore(%6 : memref<!tpu.dma_semaphore, #tpu.memory_space<semaphore_mem>>)
    %c1 = arith.constant 1 : index
    %7 = memref.load %arg1[%c1] : memref<16xi32, #tpu.memory_space<smem>>
    %c1_i32 = arith.constant 1 : i32
    %c1_i32_3 = arith.constant 1 : i32
    %c0_i32_4 = arith.constant 0 : i32
    %8 = tpu.memref_slice %arg2[%7, %c0_i32_4] : memref<50x32xf32, #tpu.memory_space<any>> -> memref<1x32xf32, #tpu.memory_space<any>>
    %9 = tpu.memref_squeeze %8 : memref<1x32xf32, #tpu.memory_space<any>> -> memref<32xf32, #tpu.memory_space<any>>
    %c0_i32_5 = arith.constant 0 : i32
    %10 = tpu.memref_slice %arg3[%c1_i32, %c0_i32_5] : memref<16x32xf32, #tpu.memory_space<vmem>> -> memref<1x32xf32, #tpu.memory_space<vmem>>
    %11 = tpu.memref_squeeze %10 : memref<1x32xf32, #tpu.memory_space<vmem>> -> memref<32xf32, #tpu.memory_space<vmem>>
    %12 = tpu.memref_slice %arg4[%c1_i32_3] : memref<16x!tpu.dma_semaphore, #tpu.memory_space<semaphore_mem>> -> memref<1x!tpu.dma_semaphore, #tpu.memory_space<semaphore_mem>>
    %13 = tpu.memref_squeeze %12 : memref<1x!tpu.dma_semaphore, #tpu.memory_space<semaphore_mem>> -> memref<!tpu.dma_semaphore, #tpu.memory_space<semaphore_mem>>
    tpu.enqueue_dma source(%9 : memref<32xf32, #tpu.memory_space<any>>) target(%11 : memref<32xf32, #tpu.memory_space<vmem>>) target_semaphore(%13 : memref<!tpu.dma_semaphore, #tpu.memory_space<semaphore_mem>>)
    %c2 = arith.constant 2 : index
    %14 = memref.load %arg1[%c2] : memref<16xi32, #tpu.memory_space<smem>>
    %c2_i32 = arith.constant 2 : i32
    %c2_i32_6 = arith.constant 2 : i32
    %c0_i32_7 = arith.constant 0 : i32
    %15 = tpu.memref_slice %arg2[%14, %c0_i32_7] : memref<50x32xf32, #tpu.memory_space<any>> -> memref<1x32xf32, #tpu.memory_space<any>>
    %16 = tpu.memref_squeeze %15 : memref<1x32xf32, #tpu.memory_space<any>> -> memref<32xf32, #tpu.memory_space<any>>
    %c0_i32_8 = arith.constant 0 : i32
    %17 = tpu.memref_slice %arg3[%c2_i32, %c0_i32_8] : memref<16x32xf32, #tpu.memory_space<vmem>> -> memref<1x32xf32, #tpu.memory_space<vmem>>
    %18 = tpu.memref_squeeze %17 : memref<1x32xf32, #tpu.memory_space<vmem>> -> memref<32xf32, #tpu.memory_space<vmem>>
    %19 = tpu.memref_slice %arg4[%c2_i32_6] : memref<16x!tpu.dma_semaphore, #tpu.memory_space<semaphore_mem>> -> memref<1x!tpu.dma_semaphore, #tpu.memory_space<semaphore_mem>>
    %20 = tpu.memref_squeeze %19 : memref<1x!tpu.dma_semaphore, #tpu.memory_space<semaphore_mem>> -> memref<!tpu.dma_semaphore, #tpu.memory_space<semaphore_mem>>
    tpu.enqueue_dma source(%16 : memref<32xf32, #tpu.memory_space<any>>) target(%18 : memref<32xf32, #tpu.memory_space<vmem>>) target_semaphore(%20 : memref<!tpu.dma_semaphore, #tpu.memory_space<semaphore_mem>>)
    %c3 = arith.constant 3 : index
    %21 = memref.load %arg1[%c3] : memref<16xi32, #tpu.memory_space<smem>>
    %c3_i32 = arith.constant 3 : i32
    %c3_i32_9 = arith.constant 3 : i32
    %c0_i32_10 = arith.constant 0 : i32
    %22 = tpu.memref_slice %arg2[%21, %c0_i32_10] : memref<50x32xf32, #tpu.memory_space<any>> -> memref<1x32xf32, #tpu.memory_space<any>>
    %23 = tpu.memref_squeeze %22 : memref<1x32xf32, #tpu.memory_space<any>> -> memref<32xf32, #tpu.memory_space<any>>
    %c0_i32_11 = arith.constant 0 : i32
    %24 = tpu.memref_slice %arg3[%c3_i32, %c0_i32_11] : memref<16x32xf32, #tpu.memory_space<vmem>> -> memref<1x32xf32, #tpu.memory_space<vmem>>
    %25 = tpu.memref_squeeze %24 : memref<1x32xf32, #tpu.memory_space<vmem>> -> memref<32xf32, #tpu.memory_space<vmem>>
    %26 = tpu.memref_slice %arg4[%c3_i32_9] : memref<16x!tpu.dma_semaphore, #tpu.memory_space<semaphore_mem>> -> memref<1x!tpu.dma_semaphore, #tpu.memory_space<semaphore_mem>>
    %27 = tpu.memref_squeeze %26 : memref<1x!tpu.dma_semaphore, #tpu.memory_space<semaphore_mem>> -> memref<!tpu.dma_semaphore, #tpu.memory_space<semaphore_mem>>
    tpu.enqueue_dma source(%23 : memref<32xf32, #tpu.memory_space<any>>) target(%25 : memref<32xf32, #tpu.memory_space<vmem>>) target_semaphore(%27 : memref<!tpu.dma_semaphore, #tpu.memory_space<semaphore_mem>>)
    %c4 = arith.constant 4 : index
    %28 = memref.load %arg1[%c4] : memref<16xi32, #tpu.memory_space<smem>>
    %c4_i32 = arith.constant 4 : i32
    %c4_i32_12 = arith.constant 4 : i32
    %c0_i32_13 = arith.constant 0 : i32
    %29 = tpu.memref_slice %arg2[%28, %c0_i32_13] : memref<50x32xf32, #tpu.memory_space<any>> -> memref<1x32xf32, #tpu.memory_space<any>>
    %30 = tpu.memref_squeeze %29 : memref<1x32xf32, #tpu.memory_space<any>> -> memref<32xf32, #tpu.memory_space<any>>
    %c0_i32_14 = arith.constant 0 : i32
    %31 = tpu.memref_slice %arg3[%c4_i32, %c0_i32_14] : memref<16x32xf32, #tpu.memory_space<vmem>> -> memref<1x32xf32, #tpu.memory_space<vmem>>
    %32 = tpu.memref_squeeze %31 : memref<1x32xf32, #tpu.memory_space<vmem>> -> memref<32xf32, #tpu.memory_space<vmem>>
    %33 = tpu.memref_slice %arg4[%c4_i32_12] : memref<16x!tpu.dma_semaphore, #tpu.memory_space<semaphore_mem>> -> memref<1x!tpu.dma_semaphore, #tpu.memory_space<semaphore_mem>>
    %34 = tpu.memref_squeeze %33 : memref<1x!tpu.dma_semaphore, #tpu.memory_space<semaphore_mem>> -> memref<!tpu.dma_semaphore, #tpu.memory_space<semaphore_mem>>
    tpu.enqueue_dma source(%30 : memref<32xf32, #tpu.memory_space<any>>) target(%32 : memref<32xf32, #tpu.memory_space<vmem>>) target_semaphore(%34 : memref<!tpu.dma_semaphore, #tpu.memory_space<semaphore_mem>>)
    %c5 = arith.constant 5 : index
    %35 = memref.load %arg1[%c5] : memref<16xi32, #tpu.memory_space<smem>>
    %c5_i32 = arith.constant 5 : i32
    %c5_i32_15 = arith.constant 5 : i32
    %c0_i32_16 = arith.constant 0 : i32
    %36 = tpu.memref_slice %arg2[%35, %c0_i32_16] : memref<50x32xf32, #tpu.memory_space<any>> -> memref<1x32xf32, #tpu.memory_space<any>>
    %37 = tpu.memref_squeeze %36 : memref<1x32xf32, #tpu.memory_space<any>> -> memref<32xf32, #tpu.memory_space<any>>
    %c0_i32_17 = arith.constant 0 : i32
    %38 = tpu.memref_slice %arg3[%c5_i32, %c0_i32_17] : memref<16x32xf32, #tpu.memory_space<vmem>> -> memref<1x32xf32, #tpu.memory_space<vmem>>
    %39 = tpu.memref_squeeze %38 : memref<1x32xf32, #tpu.memory_space<vmem>> -> memref<32xf32, #tpu.memory_space<vmem>>
    %40 = tpu.memref_slice %arg4[%c5_i32_15] : memref<16x!tpu.dma_semaphore, #tpu.memory_space<semaphore_mem>> -> memref<1x!tpu.dma_semaphore, #tpu.memory_space<semaphore_mem>>
    %41 = tpu.memref_squeeze %40 : memref<1x!tpu.dma_semaphore, #tpu.memory_space<semaphore_mem>> -> memref<!tpu.dma_semaphore, #tpu.memory_space<semaphore_mem>>
    tpu.enqueue_dma source(%37 : memref<32xf32, #tpu.memory_space<any>>) target(%39 : memref<32xf32, #tpu.memory_space<vmem>>) target_semaphore(%41 : memref<!tpu.dma_semaphore, #tpu.memory_space<semaphore_mem>>)
    %c6 = arith.constant 6 : index
    %42 = memref.load %arg1[%c6] : memref<16xi32, #tpu.memory_space<smem>>
    %c6_i32 = arith.constant 6 : i32
    %c6_i32_18 = arith.constant 6 : i32
    %c0_i32_19 = arith.constant 0 : i32
    %43 = tpu.memref_slice %arg2[%42, %c0_i32_19] : memref<50x32xf32, #tpu.memory_space<any>> -> memref<1x32xf32, #tpu.memory_space<any>>
    %44 = tpu.memref_squeeze %43 : memref<1x32xf32, #tpu.memory_space<any>> -> memref<32xf32, #tpu.memory_space<any>>
    %c0_i32_20 = arith.constant 0 : i32
    %45 = tpu.memref_slice %arg3[%c6_i32, %c0_i32_20] : memref<16x32xf32, #tpu.memory_space<vmem>> -> memref<1x32xf32, #tpu.memory_space<vmem>>
    %46 = tpu.memref_squeeze %45 : memref<1x32xf32, #tpu.memory_space<vmem>> -> memref<32xf32, #tpu.memory_space<vmem>>
    %47 = tpu.memref_slice %arg4[%c6_i32_18] : memref<16x!tpu.dma_semaphore, #tpu.memory_space<semaphore_mem>> -> memref<1x!tpu.dma_semaphore, #tpu.memory_space<semaphore_mem>>
    %48 = tpu.memref_squeeze %47 : memref<1x!tpu.dma_semaphore, #tpu.memory_space<semaphore_mem>> -> memref<!tpu.dma_semaphore, #tpu.memory_space<semaphore_mem>>
    tpu.enqueue_dma source(%44 : memref<32xf32, #tpu.memory_space<any>>) target(%46 : memref<32xf32, #tpu.memory_space<vmem>>) target_semaphore(%48 : memref<!tpu.dma_semaphore, #tpu.memory_space<semaphore_mem>>)
    %c7 = arith.constant 7 : index
    %49 = memref.load %arg1[%c7] : memref<16xi32, #tpu.memory_space<smem>>
    %c7_i32 = arith.constant 7 : i32
    %c7_i32_21 = arith.constant 7 : i32
    %c0_i32_22 = arith.constant 0 : i32
    %50 = tpu.memref_slice %arg2[%49, %c0_i32_22] : memref<50x32xf32, #tpu.memory_space<any>> -> memref<1x32xf32, #tpu.memory_space<any>>
    %51 = tpu.memref_squeeze %50 : memref<1x32xf32, #tpu.memory_space<any>> -> memref<32xf32, #tpu.memory_space<any>>
    %c0_i32_23 = arith.constant 0 : i32
    %52 = tpu.memref_slice %arg3[%c7_i32, %c0_i32_23] : memref<16x32xf32, #tpu.memory_space<vmem>> -> memref<1x32xf32, #tpu.memory_space<vmem>>
    %53 = tpu.memref_squeeze %52 : memref<1x32xf32, #tpu.memory_space<vmem>> -> memref<32xf32, #tpu.memory_space<vmem>>
    %54 = tpu.memref_slice %arg4[%c7_i32_21] : memref<16x!tpu.dma_semaphore, #tpu.memory_space<semaphore_mem>> -> memref<1x!tpu.dma_semaphore, #tpu.memory_space<semaphore_mem>>
    %55 = tpu.memref_squeeze %54 : memref<1x!tpu.dma_semaphore, #tpu.memory_space<semaphore_mem>> -> memref<!tpu.dma_semaphore, #tpu.memory_space<semaphore_mem>>
    tpu.enqueue_dma source(%51 : memref<32xf32, #tpu.memory_space<any>>) target(%53 : memref<32xf32, #tpu.memory_space<vmem>>) target_semaphore(%55 : memref<!tpu.dma_semaphore, #tpu.memory_space<semaphore_mem>>)
    %c8 = arith.constant 8 : index
    %56 = memref.load %arg1[%c8] : memref<16xi32, #tpu.memory_space<smem>>
    %c8_i32 = arith.constant 8 : i32
    %c8_i32_24 = arith.constant 8 : i32
    %c0_i32_25 = arith.constant 0 : i32
    %57 = tpu.memref_slice %arg2[%56, %c0_i32_25] : memref<50x32xf32, #tpu.memory_space<any>> -> memref<1x32xf32, #tpu.memory_space<any>>
    %58 = tpu.memref_squeeze %57 : memref<1x32xf32, #tpu.memory_space<any>> -> memref<32xf32, #tpu.memory_space<any>>
    %c0_i32_26 = arith.constant 0 : i32
    %59 = tpu.memref_slice %arg3[%c8_i32, %c0_i32_26] : memref<16x32xf32, #tpu.memory_space<vmem>> -> memref<1x32xf32, #tpu.memory_space<vmem>>
    %60 = tpu.memref_squeeze %59 : memref<1x32xf32, #tpu.memory_space<vmem>> -> memref<32xf32, #tpu.memory_space<vmem>>
    %61 = tpu.memref_slice %arg4[%c8_i32_24] : memref<16x!tpu.dma_semaphore, #tpu.memory_space<semaphore_mem>> -> memref<1x!tpu.dma_semaphore, #tpu.memory_space<semaphore_mem>>
    %62 = tpu.memref_squeeze %61 : memref<1x!tpu.dma_semaphore, #tpu.memory_space<semaphore_mem>> -> memref<!tpu.dma_semaphore, #tpu.memory_space<semaphore_mem>>
    tpu.enqueue_dma source(%58 : memref<32xf32, #tpu.memory_space<any>>) target(%60 : memref<32xf32, #tpu.memory_space<vmem>>) target_semaphore(%62 : memref<!tpu.dma_semaphore, #tpu.memory_space<semaphore_mem>>)
    %c9 = arith.constant 9 : index
    %63 = memref.load %arg1[%c9] : memref<16xi32, #tpu.memory_space<smem>>
    %c9_i32 = arith.constant 9 : i32
    %c9_i32_27 = arith.constant 9 : i32
    %c0_i32_28 = arith.constant 0 : i32
    %64 = tpu.memref_slice %arg2[%63, %c0_i32_28] : memref<50x32xf32, #tpu.memory_space<any>> -> memref<1x32xf32, #tpu.memory_space<any>>
    %65 = tpu.memref_squeeze %64 : memref<1x32xf32, #tpu.memory_space<any>> -> memref<32xf32, #tpu.memory_space<any>>
    %c0_i32_29 = arith.constant 0 : i32
    %66 = tpu.memref_slice %arg3[%c9_i32, %c0_i32_29] : memref<16x32xf32, #tpu.memory_space<vmem>> -> memref<1x32xf32, #tpu.memory_space<vmem>>
    %67 = tpu.memref_squeeze %66 : memref<1x32xf32, #tpu.memory_space<vmem>> -> memref<32xf32, #tpu.memory_space<vmem>>
    %68 = tpu.memref_slice %arg4[%c9_i32_27] : memref<16x!tpu.dma_semaphore, #tpu.memory_space<semaphore_mem>> -> memref<1x!tpu.dma_semaphore, #tpu.memory_space<semaphore_mem>>
    %69 = tpu.memref_squeeze %68 : memref<1x!tpu.dma_semaphore, #tpu.memory_space<semaphore_mem>> -> memref<!tpu.dma_semaphore, #tpu.memory_space<semaphore_mem>>
    tpu.enqueue_dma source(%65 : memref<32xf32, #tpu.memory_space<any>>) target(%67 : memref<32xf32, #tpu.memory_space<vmem>>) target_semaphore(%69 : memref<!tpu.dma_semaphore, #tpu.memory_space<semaphore_mem>>)
    %c10 = arith.constant 10 : index
    %70 = memref.load %arg1[%c10] : memref<16xi32, #tpu.memory_space<smem>>
    %c10_i32 = arith.constant 10 : i32
    %c10_i32_30 = arith.constant 10 : i32
    %c0_i32_31 = arith.constant 0 : i32
    %71 = tpu.memref_slice %arg2[%70, %c0_i32_31] : memref<50x32xf32, #tpu.memory_space<any>> -> memref<1x32xf32, #tpu.memory_space<any>>
    %72 = tpu.memref_squeeze %71 : memref<1x32xf32, #tpu.memory_space<any>> -> memref<32xf32, #tpu.memory_space<any>>
    %c0_i32_32 = arith.constant 0 : i32
    %73 = tpu.memref_slice %arg3[%c10_i32, %c0_i32_32] : memref<16x32xf32, #tpu.memory_space<vmem>> -> memref<1x32xf32, #tpu.memory_space<vmem>>
    %74 = tpu.memref_squeeze %73 : memref<1x32xf32, #tpu.memory_space<vmem>> -> memref<32xf32, #tpu.memory_space<vmem>>
    %75 = tpu.memref_slice %arg4[%c10_i32_30] : memref<16x!tpu.dma_semaphore, #tpu.memory_space<semaphore_mem>> -> memref<1x!tpu.dma_semaphore, #tpu.memory_space<semaphore_mem>>
    %76 = tpu.memref_squeeze %75 : memref<1x!tpu.dma_semaphore, #tpu.memory_space<semaphore_mem>> -> memref<!tpu.dma_semaphore, #tpu.memory_space<semaphore_mem>>
    tpu.enqueue_dma source(%72 : memref<32xf32, #tpu.memory_space<any>>) target(%74 : memref<32xf32, #tpu.memory_space<vmem>>) target_semaphore(%76 : memref<!tpu.dma_semaphore, #tpu.memory_space<semaphore_mem>>)
    %c11 = arith.constant 11 : index
    %77 = memref.load %arg1[%c11] : memref<16xi32, #tpu.memory_space<smem>>
    %c11_i32 = arith.constant 11 : i32
    %c11_i32_33 = arith.constant 11 : i32
    %c0_i32_34 = arith.constant 0 : i32
    %78 = tpu.memref_slice %arg2[%77, %c0_i32_34] : memref<50x32xf32, #tpu.memory_space<any>> -> memref<1x32xf32, #tpu.memory_space<any>>
    %79 = tpu.memref_squeeze %78 : memref<1x32xf32, #tpu.memory_space<any>> -> memref<32xf32, #tpu.memory_space<any>>
    %c0_i32_35 = arith.constant 0 : i32
    %80 = tpu.memref_slice %arg3[%c11_i32, %c0_i32_35] : memref<16x32xf32, #tpu.memory_space<vmem>> -> memref<1x32xf32, #tpu.memory_space<vmem>>
    %81 = tpu.memref_squeeze %80 : memref<1x32xf32, #tpu.memory_space<vmem>> -> memref<32xf32, #tpu.memory_space<vmem>>
    %82 = tpu.memref_slice %arg4[%c11_i32_33] : memref<16x!tpu.dma_semaphore, #tpu.memory_space<semaphore_mem>> -> memref<1x!tpu.dma_semaphore, #tpu.memory_space<semaphore_mem>>
    %83 = tpu.memref_squeeze %82 : memref<1x!tpu.dma_semaphore, #tpu.memory_space<semaphore_mem>> -> memref<!tpu.dma_semaphore, #tpu.memory_space<semaphore_mem>>
    tpu.enqueue_dma source(%79 : memref<32xf32, #tpu.memory_space<any>>) target(%81 : memref<32xf32, #tpu.memory_space<vmem>>) target_semaphore(%83 : memref<!tpu.dma_semaphore, #tpu.memory_space<semaphore_mem>>)
    %c12 = arith.constant 12 : index
    %84 = memref.load %arg1[%c12] : memref<16xi32, #tpu.memory_space<smem>>
    %c12_i32 = arith.constant 12 : i32
    %c12_i32_36 = arith.constant 12 : i32
    %c0_i32_37 = arith.constant 0 : i32
    %85 = tpu.memref_slice %arg2[%84, %c0_i32_37] : memref<50x32xf32, #tpu.memory_space<any>> -> memref<1x32xf32, #tpu.memory_space<any>>
    %86 = tpu.memref_squeeze %85 : memref<1x32xf32, #tpu.memory_space<any>> -> memref<32xf32, #tpu.memory_space<any>>
    %c0_i32_38 = arith.constant 0 : i32
    %87 = tpu.memref_slice %arg3[%c12_i32, %c0_i32_38] : memref<16x32xf32, #tpu.memory_space<vmem>> -> memref<1x32xf32, #tpu.memory_space<vmem>>
    %88 = tpu.memref_squeeze %87 : memref<1x32xf32, #tpu.memory_space<vmem>> -> memref<32xf32, #tpu.memory_space<vmem>>
    %89 = tpu.memref_slice %arg4[%c12_i32_36] : memref<16x!tpu.dma_semaphore, #tpu.memory_space<semaphore_mem>> -> memref<1x!tpu.dma_semaphore, #tpu.memory_space<semaphore_mem>>
    %90 = tpu.memref_squeeze %89 : memref<1x!tpu.dma_semaphore, #tpu.memory_space<semaphore_mem>> -> memref<!tpu.dma_semaphore, #tpu.memory_space<semaphore_mem>>
    tpu.enqueue_dma source(%86 : memref<32xf32, #tpu.memory_space<any>>) target(%88 : memref<32xf32, #tpu.memory_space<vmem>>) target_semaphore(%90 : memref<!tpu.dma_semaphore, #tpu.memory_space<semaphore_mem>>)
    %c13 = arith.constant 13 : index
    %91 = memref.load %arg1[%c13] : memref<16xi32, #tpu.memory_space<smem>>
    %c13_i32 = arith.constant 13 : i32
    %c13_i32_39 = arith.constant 13 : i32
    %c0_i32_40 = arith.constant 0 : i32
    %92 = tpu.memref_slice %arg2[%91, %c0_i32_40] : memref<50x32xf32, #tpu.memory_space<any>> -> memref<1x32xf32, #tpu.memory_space<any>>
    %93 = tpu.memref_squeeze %92 : memref<1x32xf32, #tpu.memory_space<any>> -> memref<32xf32, #tpu.memory_space<any>>
    %c0_i32_41 = arith.constant 0 : i32
    %94 = tpu.memref_slice %arg3[%c13_i32, %c0_i32_41] : memref<16x32xf32, #tpu.memory_space<vmem>> -> memref<1x32xf32, #tpu.memory_space<vmem>>
    %95 = tpu.memref_squeeze %94 : memref<1x32xf32, #tpu.memory_space<vmem>> -> memref<32xf32, #tpu.memory_space<vmem>>
    %96 = tpu.memref_slice %arg4[%c13_i32_39] : memref<16x!tpu.dma_semaphore, #tpu.memory_space<semaphore_mem>> -> memref<1x!tpu.dma_semaphore, #tpu.memory_space<semaphore_mem>>
    %97 = tpu.memref_squeeze %96 : memref<1x!tpu.dma_semaphore, #tpu.memory_space<semaphore_mem>> -> memref<!tpu.dma_semaphore, #tpu.memory_space<semaphore_mem>>
    tpu.enqueue_dma source(%93 : memref<32xf32, #tpu.memory_space<any>>) target(%95 : memref<32xf32, #tpu.memory_space<vmem>>) target_semaphore(%97 : memref<!tpu.dma_semaphore, #tpu.memory_space<semaphore_mem>>)
    %c14 = arith.constant 14 : index
    %98 = memref.load %arg1[%c14] : memref<16xi32, #tpu.memory_space<smem>>
    %c14_i32 = arith.constant 14 : i32
    %c14_i32_42 = arith.constant 14 : i32
    %c0_i32_43 = arith.constant 0 : i32
    %99 = tpu.memref_slice %arg2[%98, %c0_i32_43] : memref<50x32xf32, #tpu.memory_space<any>> -> memref<1x32xf32, #tpu.memory_space<any>>
    %100 = tpu.memref_squeeze %99 : memref<1x32xf32, #tpu.memory_space<any>> -> memref<32xf32, #tpu.memory_space<any>>
    %c0_i32_44 = arith.constant 0 : i32
    %101 = tpu.memref_slice %arg3[%c14_i32, %c0_i32_44] : memref<16x32xf32, #tpu.memory_space<vmem>> -> memref<1x32xf32, #tpu.memory_space<vmem>>
    %102 = tpu.memref_squeeze %101 : memref<1x32xf32, #tpu.memory_space<vmem>> -> memref<32xf32, #tpu.memory_space<vmem>>
    %103 = tpu.memref_slice %arg4[%c14_i32_42] : memref<16x!tpu.dma_semaphore, #tpu.memory_space<semaphore_mem>> -> memref<1x!tpu.dma_semaphore, #tpu.memory_space<semaphore_mem>>
    %104 = tpu.memref_squeeze %103 : memref<1x!tpu.dma_semaphore, #tpu.memory_space<semaphore_mem>> -> memref<!tpu.dma_semaphore, #tpu.memory_space<semaphore_mem>>
    tpu.enqueue_dma source(%100 : memref<32xf32, #tpu.memory_space<any>>) target(%102 : memref<32xf32, #tpu.memory_space<vmem>>) target_semaphore(%104 : memref<!tpu.dma_semaphore, #tpu.memory_space<semaphore_mem>>)
    %c15 = arith.constant 15 : index
    %105 = memref.load %arg1[%c15] : memref<16xi32, #tpu.memory_space<smem>>
    %c15_i32 = arith.constant 15 : i32
    %c15_i32_45 = arith.constant 15 : i32
    %c0_i32_46 = arith.constant 0 : i32
    %106 = tpu.memref_slice %arg2[%105, %c0_i32_46] : memref<50x32xf32, #tpu.memory_space<any>> -> memref<1x32xf32, #tpu.memory_space<any>>
    %107 = tpu.memref_squeeze %106 : memref<1x32xf32, #tpu.memory_space<any>> -> memref<32xf32, #tpu.memory_space<any>>
    %c0_i32_47 = arith.constant 0 : i32
    %108 = tpu.memref_slice %arg3[%c15_i32, %c0_i32_47] : memref<16x32xf32, #tpu.memory_space<vmem>> -> memref<1x32xf32, #tpu.memory_space<vmem>>
    %109 = tpu.memref_squeeze %108 : memref<1x32xf32, #tpu.memory_space<vmem>> -> memref<32xf32, #tpu.memory_space<vmem>>
    %110 = tpu.memref_slice %arg4[%c15_i32_45] : memref<16x!tpu.dma_semaphore, #tpu.memory_space<semaphore_mem>> -> memref<1x!tpu.dma_semaphore, #tpu.memory_space<semaphore_mem>>
    %111 = tpu.memref_squeeze %110 : memref<1x!tpu.dma_semaphore, #tpu.memory_space<semaphore_mem>> -> memref<!tpu.dma_semaphore, #tpu.memory_space<semaphore_mem>>
    tpu.enqueue_dma source(%107 : memref<32xf32, #tpu.memory_space<any>>) target(%109 : memref<32xf32, #tpu.memory_space<vmem>>) target_semaphore(%111 : memref<!tpu.dma_semaphore, #tpu.memory_space<semaphore_mem>>)
    %c0_i32_48 = arith.constant 0 : i32
    %c0_i32_49 = arith.constant 0 : i32
    %c0_i32_50 = arith.constant 0 : i32
    %112 = tpu.memref_slice %arg2[%0, %c0_i32_50] : memref<50x32xf32, #tpu.memory_space<any>> -> memref<1x32xf32, #tpu.memory_space<any>>
    %113 = tpu.memref_squeeze %112 : memref<1x32xf32, #tpu.memory_space<any>> -> memref<32xf32, #tpu.memory_space<any>>
    %c0_i32_51 = arith.constant 0 : i32
    %114 = tpu.memref_slice %arg3[%c0_i32_48, %c0_i32_51] : memref<16x32xf32, #tpu.memory_space<vmem>> -> memref<1x32xf32, #tpu.memory_space<vmem>>
    %115 = tpu.memref_squeeze %114 : memref<1x32xf32, #tpu.memory_space<vmem>> -> memref<32xf32, #tpu.memory_space<vmem>>
    %116 = tpu.memref_slice %arg4[%c0_i32_49] : memref<16x!tpu.dma_semaphore, #tpu.memory_space<semaphore_mem>> -> memref<1x!tpu.dma_semaphore, #tpu.memory_space<semaphore_mem>>
    %117 = tpu.memref_squeeze %116 : memref<1x!tpu.dma_semaphore, #tpu.memory_space<semaphore_mem>> -> memref<!tpu.dma_semaphore, #tpu.memory_space<semaphore_mem>>
    tpu.wait_dma2 semaphore(%117 : memref<!tpu.dma_semaphore, #tpu.memory_space<semaphore_mem>>) src(%113 : memref<32xf32, #tpu.memory_space<any>>) dst(%115 : memref<32xf32, #tpu.memory_space<vmem>>)
    %c1_i32_52 = arith.constant 1 : i32
    %c1_i32_53 = arith.constant 1 : i32
    %c0_i32_54 = arith.constant 0 : i32
    %118 = tpu.memref_slice %arg2[%7, %c0_i32_54] : memref<50x32xf32, #tpu.memory_space<any>> -> memref<1x32xf32, #tpu.memory_space<any>>
    %119 = tpu.memref_squeeze %118 : memref<1x32xf32, #tpu.memory_space<any>> -> memref<32xf32, #tpu.memory_space<any>>
    %c0_i32_55 = arith.constant 0 : i32
    %120 = tpu.memref_slice %arg3[%c1_i32_52, %c0_i32_55] : memref<16x32xf32, #tpu.memory_space<vmem>> -> memref<1x32xf32, #tpu.memory_space<vmem>>
    %121 = tpu.memref_squeeze %120 : memref<1x32xf32, #tpu.memory_space<vmem>> -> memref<32xf32, #tpu.memory_space<vmem>>
    %122 = tpu.memref_slice %arg4[%c1_i32_53] : memref<16x!tpu.dma_semaphore, #tpu.memory_space<semaphore_mem>> -> memref<1x!tpu.dma_semaphore, #tpu.memory_space<semaphore_mem>>
    %123 = tpu.memref_squeeze %122 : memref<1x!tpu.dma_semaphore, #tpu.memory_space<semaphore_mem>> -> memref<!tpu.dma_semaphore, #tpu.memory_space<semaphore_mem>>
    tpu.wait_dma2 semaphore(%123 : memref<!tpu.dma_semaphore, #tpu.memory_space<semaphore_mem>>) src(%119 : memref<32xf32, #tpu.memory_space<any>>) dst(%121 : memref<32xf32, #tpu.memory_space<vmem>>)
    %c2_i32_56 = arith.constant 2 : i32
    %c2_i32_57 = arith.constant 2 : i32
    %c0_i32_58 = arith.constant 0 : i32
    %124 = tpu.memref_slice %arg2[%14, %c0_i32_58] : memref<50x32xf32, #tpu.memory_space<any>> -> memref<1x32xf32, #tpu.memory_space<any>>
    %125 = tpu.memref_squeeze %124 : memref<1x32xf32, #tpu.memory_space<any>> -> memref<32xf32, #tpu.memory_space<any>>
    %c0_i32_59 = arith.constant 0 : i32
    %126 = tpu.memref_slice %arg3[%c2_i32_56, %c0_i32_59] : memref<16x32xf32, #tpu.memory_space<vmem>> -> memref<1x32xf32, #tpu.memory_space<vmem>>
    %127 = tpu.memref_squeeze %126 : memref<1x32xf32, #tpu.memory_space<vmem>> -> memref<32xf32, #tpu.memory_space<vmem>>
    %128 = tpu.memref_slice %arg4[%c2_i32_57] : memref<16x!tpu.dma_semaphore, #tpu.memory_space<semaphore_mem>> -> memref<1x!tpu.dma_semaphore, #tpu.memory_space<semaphore_mem>>
    %129 = tpu.memref_squeeze %128 : memref<1x!tpu.dma_semaphore, #tpu.memory_space<semaphore_mem>> -> memref<!tpu.dma_semaphore, #tpu.memory_space<semaphore_mem>>
    tpu.wait_dma2 semaphore(%129 : memref<!tpu.dma_semaphore, #tpu.memory_space<semaphore_mem>>) src(%125 : memref<32xf32, #tpu.memory_space<any>>) dst(%127 : memref<32xf32, #tpu.memory_space<vmem>>)
    %c3_i32_60 = arith.constant 3 : i32
    %c3_i32_61 = arith.constant 3 : i32
    %c0_i32_62 = arith.constant 0 : i32
    %130 = tpu.memref_slice %arg2[%21, %c0_i32_62] : memref<50x32xf32, #tpu.memory_space<any>> -> memref<1x32xf32, #tpu.memory_space<any>>
    %131 = tpu.memref_squeeze %130 : memref<1x32xf32, #tpu.memory_space<any>> -> memref<32xf32, #tpu.memory_space<any>>
    %c0_i32_63 = arith.constant 0 : i32
    %132 = tpu.memref_slice %arg3[%c3_i32_60, %c0_i32_63] : memref<16x32xf32, #tpu.memory_space<vmem>> -> memref<1x32xf32, #tpu.memory_space<vmem>>
    %133 = tpu.memref_squeeze %132 : memref<1x32xf32, #tpu.memory_space<vmem>> -> memref<32xf32, #tpu.memory_space<vmem>>
    %134 = tpu.memref_slice %arg4[%c3_i32_61] : memref<16x!tpu.dma_semaphore, #tpu.memory_space<semaphore_mem>> -> memref<1x!tpu.dma_semaphore, #tpu.memory_space<semaphore_mem>>
    %135 = tpu.memref_squeeze %134 : memref<1x!tpu.dma_semaphore, #tpu.memory_space<semaphore_mem>> -> memref<!tpu.dma_semaphore, #tpu.memory_space<semaphore_mem>>
    tpu.wait_dma2 semaphore(%135 : memref<!tpu.dma_semaphore, #tpu.memory_space<semaphore_mem>>) src(%131 : memref<32xf32, #tpu.memory_space<any>>) dst(%133 : memref<32xf32, #tpu.memory_space<vmem>>)
    %c4_i32_64 = arith.constant 4 : i32
    %c4_i32_65 = arith.constant 4 : i32
    %c0_i32_66 = arith.constant 0 : i32
    %136 = tpu.memref_slice %arg2[%28, %c0_i32_66] : memref<50x32xf32, #tpu.memory_space<any>> -> memref<1x32xf32, #tpu.memory_space<any>>
    %137 = tpu.memref_squeeze %136 : memref<1x32xf32, #tpu.memory_space<any>> -> memref<32xf32, #tpu.memory_space<any>>
    %c0_i32_67 = arith.constant 0 : i32
    %138 = tpu.memref_slice %arg3[%c4_i32_64, %c0_i32_67] : memref<16x32xf32, #tpu.memory_space<vmem>> -> memref<1x32xf32, #tpu.memory_space<vmem>>
    %139 = tpu.memref_squeeze %138 : memref<1x32xf32, #tpu.memory_space<vmem>> -> memref<32xf32, #tpu.memory_space<vmem>>
    %140 = tpu.memref_slice %arg4[%c4_i32_65] : memref<16x!tpu.dma_semaphore, #tpu.memory_space<semaphore_mem>> -> memref<1x!tpu.dma_semaphore, #tpu.memory_space<semaphore_mem>>
    %141 = tpu.memref_squeeze %140 : memref<1x!tpu.dma_semaphore, #tpu.memory_space<semaphore_mem>> -> memref<!tpu.dma_semaphore, #tpu.memory_space<semaphore_mem>>
    tpu.wait_dma2 semaphore(%141 : memref<!tpu.dma_semaphore, #tpu.memory_space<semaphore_mem>>) src(%137 : memref<32xf32, #tpu.memory_space<any>>) dst(%139 : memref<32xf32, #tpu.memory_space<vmem>>)
    %c5_i32_68 = arith.constant 5 : i32
    %c5_i32_69 = arith.constant 5 : i32
    %c0_i32_70 = arith.constant 0 : i32
    %142 = tpu.memref_slice %arg2[%35, %c0_i32_70] : memref<50x32xf32, #tpu.memory_space<any>> -> memref<1x32xf32, #tpu.memory_space<any>>
    %143 = tpu.memref_squeeze %142 : memref<1x32xf32, #tpu.memory_space<any>> -> memref<32xf32, #tpu.memory_space<any>>
    %c0_i32_71 = arith.constant 0 : i32
    %144 = tpu.memref_slice %arg3[%c5_i32_68, %c0_i32_71] : memref<16x32xf32, #tpu.memory_space<vmem>> -> memref<1x32xf32, #tpu.memory_space<vmem>>
    %145 = tpu.memref_squeeze %144 : memref<1x32xf32, #tpu.memory_space<vmem>> -> memref<32xf32, #tpu.memory_space<vmem>>
    %146 = tpu.memref_slice %arg4[%c5_i32_69] : memref<16x!tpu.dma_semaphore, #tpu.memory_space<semaphore_mem>> -> memref<1x!tpu.dma_semaphore, #tpu.memory_space<semaphore_mem>>
    %147 = tpu.memref_squeeze %146 : memref<1x!tpu.dma_semaphore, #tpu.memory_space<semaphore_mem>> -> memref<!tpu.dma_semaphore, #tpu.memory_space<semaphore_mem>>
    tpu.wait_dma2 semaphore(%147 : memref<!tpu.dma_semaphore, #tpu.memory_space<semaphore_mem>>) src(%143 : memref<32xf32, #tpu.memory_space<any>>) dst(%145 : memref<32xf32, #tpu.memory_space<vmem>>)
    %c6_i32_72 = arith.constant 6 : i32
    %c6_i32_73 = arith.constant 6 : i32
    %c0_i32_74 = arith.constant 0 : i32
    %148 = tpu.memref_slice %arg2[%42, %c0_i32_74] : memref<50x32xf32, #tpu.memory_space<any>> -> memref<1x32xf32, #tpu.memory_space<any>>
    %149 = tpu.memref_squeeze %148 : memref<1x32xf32, #tpu.memory_space<any>> -> memref<32xf32, #tpu.memory_space<any>>
    %c0_i32_75 = arith.constant 0 : i32
    %150 = tpu.memref_slice %arg3[%c6_i32_72, %c0_i32_75] : memref<16x32xf32, #tpu.memory_space<vmem>> -> memref<1x32xf32, #tpu.memory_space<vmem>>
    %151 = tpu.memref_squeeze %150 : memref<1x32xf32, #tpu.memory_space<vmem>> -> memref<32xf32, #tpu.memory_space<vmem>>
    %152 = tpu.memref_slice %arg4[%c6_i32_73] : memref<16x!tpu.dma_semaphore, #tpu.memory_space<semaphore_mem>> -> memref<1x!tpu.dma_semaphore, #tpu.memory_space<semaphore_mem>>
    %153 = tpu.memref_squeeze %152 : memref<1x!tpu.dma_semaphore, #tpu.memory_space<semaphore_mem>> -> memref<!tpu.dma_semaphore, #tpu.memory_space<semaphore_mem>>
    tpu.wait_dma2 semaphore(%153 : memref<!tpu.dma_semaphore, #tpu.memory_space<semaphore_mem>>) src(%149 : memref<32xf32, #tpu.memory_space<any>>) dst(%151 : memref<32xf32, #tpu.memory_space<vmem>>)
    %c7_i32_76 = arith.constant 7 : i32
    %c7_i32_77 = arith.constant 7 : i32
    %c0_i32_78 = arith.constant 0 : i32
    %154 = tpu.memref_slice %arg2[%49, %c0_i32_78] : memref<50x32xf32, #tpu.memory_space<any>> -> memref<1x32xf32, #tpu.memory_space<any>>
    %155 = tpu.memref_squeeze %154 : memref<1x32xf32, #tpu.memory_space<any>> -> memref<32xf32, #tpu.memory_space<any>>
    %c0_i32_79 = arith.constant 0 : i32
    %156 = tpu.memref_slice %arg3[%c7_i32_76, %c0_i32_79] : memref<16x32xf32, #tpu.memory_space<vmem>> -> memref<1x32xf32, #tpu.memory_space<vmem>>
    %157 = tpu.memref_squeeze %156 : memref<1x32xf32, #tpu.memory_space<vmem>> -> memref<32xf32, #tpu.memory_space<vmem>>
    %158 = tpu.memref_slice %arg4[%c7_i32_77] : memref<16x!tpu.dma_semaphore, #tpu.memory_space<semaphore_mem>> -> memref<1x!tpu.dma_semaphore, #tpu.memory_space<semaphore_mem>>
    %159 = tpu.memref_squeeze %158 : memref<1x!tpu.dma_semaphore, #tpu.memory_space<semaphore_mem>> -> memref<!tpu.dma_semaphore, #tpu.memory_space<semaphore_mem>>
    tpu.wait_dma2 semaphore(%159 : memref<!tpu.dma_semaphore, #tpu.memory_space<semaphore_mem>>) src(%155 : memref<32xf32, #tpu.memory_space<any>>) dst(%157 : memref<32xf32, #tpu.memory_space<vmem>>)
    %c8_i32_80 = arith.constant 8 : i32
    %c8_i32_81 = arith.constant 8 : i32
    %c0_i32_82 = arith.constant 0 : i32
    %160 = tpu.memref_slice %arg2[%56, %c0_i32_82] : memref<50x32xf32, #tpu.memory_space<any>> -> memref<1x32xf32, #tpu.memory_space<any>>
    %161 = tpu.memref_squeeze %160 : memref<1x32xf32, #tpu.memory_space<any>> -> memref<32xf32, #tpu.memory_space<any>>
    %c0_i32_83 = arith.constant 0 : i32
    %162 = tpu.memref_slice %arg3[%c8_i32_80, %c0_i32_83] : memref<16x32xf32, #tpu.memory_space<vmem>> -> memref<1x32xf32, #tpu.memory_space<vmem>>
    %163 = tpu.memref_squeeze %162 : memref<1x32xf32, #tpu.memory_space<vmem>> -> memref<32xf32, #tpu.memory_space<vmem>>
    %164 = tpu.memref_slice %arg4[%c8_i32_81] : memref<16x!tpu.dma_semaphore, #tpu.memory_space<semaphore_mem>> -> memref<1x!tpu.dma_semaphore, #tpu.memory_space<semaphore_mem>>
    %165 = tpu.memref_squeeze %164 : memref<1x!tpu.dma_semaphore, #tpu.memory_space<semaphore_mem>> -> memref<!tpu.dma_semaphore, #tpu.memory_space<semaphore_mem>>
    tpu.wait_dma2 semaphore(%165 : memref<!tpu.dma_semaphore, #tpu.memory_space<semaphore_mem>>) src(%161 : memref<32xf32, #tpu.memory_space<any>>) dst(%163 : memref<32xf32, #tpu.memory_space<vmem>>)
    %c9_i32_84 = arith.constant 9 : i32
    %c9_i32_85 = arith.constant 9 : i32
    %c0_i32_86 = arith.constant 0 : i32
    %166 = tpu.memref_slice %arg2[%63, %c0_i32_86] : memref<50x32xf32, #tpu.memory_space<any>> -> memref<1x32xf32, #tpu.memory_space<any>>
    %167 = tpu.memref_squeeze %166 : memref<1x32xf32, #tpu.memory_space<any>> -> memref<32xf32, #tpu.memory_space<any>>
    %c0_i32_87 = arith.constant 0 : i32
    %168 = tpu.memref_slice %arg3[%c9_i32_84, %c0_i32_87] : memref<16x32xf32, #tpu.memory_space<vmem>> -> memref<1x32xf32, #tpu.memory_space<vmem>>
    %169 = tpu.memref_squeeze %168 : memref<1x32xf32, #tpu.memory_space<vmem>> -> memref<32xf32, #tpu.memory_space<vmem>>
    %170 = tpu.memref_slice %arg4[%c9_i32_85] : memref<16x!tpu.dma_semaphore, #tpu.memory_space<semaphore_mem>> -> memref<1x!tpu.dma_semaphore, #tpu.memory_space<semaphore_mem>>
    %171 = tpu.memref_squeeze %170 : memref<1x!tpu.dma_semaphore, #tpu.memory_space<semaphore_mem>> -> memref<!tpu.dma_semaphore, #tpu.memory_space<semaphore_mem>>
    tpu.wait_dma2 semaphore(%171 : memref<!tpu.dma_semaphore, #tpu.memory_space<semaphore_mem>>) src(%167 : memref<32xf32, #tpu.memory_space<any>>) dst(%169 : memref<32xf32, #tpu.memory_space<vmem>>)
    %c10_i32_88 = arith.constant 10 : i32
    %c10_i32_89 = arith.constant 10 : i32
    %c0_i32_90 = arith.constant 0 : i32
    %172 = tpu.memref_slice %arg2[%70, %c0_i32_90] : memref<50x32xf32, #tpu.memory_space<any>> -> memref<1x32xf32, #tpu.memory_space<any>>
    %173 = tpu.memref_squeeze %172 : memref<1x32xf32, #tpu.memory_space<any>> -> memref<32xf32, #tpu.memory_space<any>>
    %c0_i32_91 = arith.constant 0 : i32
    %174 = tpu.memref_slice %arg3[%c10_i32_88, %c0_i32_91] : memref<16x32xf32, #tpu.memory_space<vmem>> -> memref<1x32xf32, #tpu.memory_space<vmem>>
    %175 = tpu.memref_squeeze %174 : memref<1x32xf32, #tpu.memory_space<vmem>> -> memref<32xf32, #tpu.memory_space<vmem>>
    %176 = tpu.memref_slice %arg4[%c10_i32_89] : memref<16x!tpu.dma_semaphore, #tpu.memory_space<semaphore_mem>> -> memref<1x!tpu.dma_semaphore, #tpu.memory_space<semaphore_mem>>
    %177 = tpu.memref_squeeze %176 : memref<1x!tpu.dma_semaphore, #tpu.memory_space<semaphore_mem>> -> memref<!tpu.dma_semaphore, #tpu.memory_space<semaphore_mem>>
    tpu.wait_dma2 semaphore(%177 : memref<!tpu.dma_semaphore, #tpu.memory_space<semaphore_mem>>) src(%173 : memref<32xf32, #tpu.memory_space<any>>) dst(%175 : memref<32xf32, #tpu.memory_space<vmem>>)
    %c11_i32_92 = arith.constant 11 : i32
    %c11_i32_93 = arith.constant 11 : i32
    %c0_i32_94 = arith.constant 0 : i32
    %178 = tpu.memref_slice %arg2[%77, %c0_i32_94] : memref<50x32xf32, #tpu.memory_space<any>> -> memref<1x32xf32, #tpu.memory_space<any>>
    %179 = tpu.memref_squeeze %178 : memref<1x32xf32, #tpu.memory_space<any>> -> memref<32xf32, #tpu.memory_space<any>>
    %c0_i32_95 = arith.constant 0 : i32
    %180 = tpu.memref_slice %arg3[%c11_i32_92, %c0_i32_95] : memref<16x32xf32, #tpu.memory_space<vmem>> -> memref<1x32xf32, #tpu.memory_space<vmem>>
    %181 = tpu.memref_squeeze %180 : memref<1x32xf32, #tpu.memory_space<vmem>> -> memref<32xf32, #tpu.memory_space<vmem>>
    %182 = tpu.memref_slice %arg4[%c11_i32_93] : memref<16x!tpu.dma_semaphore, #tpu.memory_space<semaphore_mem>> -> memref<1x!tpu.dma_semaphore, #tpu.memory_space<semaphore_mem>>
    %183 = tpu.memref_squeeze %182 : memref<1x!tpu.dma_semaphore, #tpu.memory_space<semaphore_mem>> -> memref<!tpu.dma_semaphore, #tpu.memory_space<semaphore_mem>>
    tpu.wait_dma2 semaphore(%183 : memref<!tpu.dma_semaphore, #tpu.memory_space<semaphore_mem>>) src(%179 : memref<32xf32, #tpu.memory_space<any>>) dst(%181 : memref<32xf32, #tpu.memory_space<vmem>>)
    %c12_i32_96 = arith.constant 12 : i32
    %c12_i32_97 = arith.constant 12 : i32
    %c0_i32_98 = arith.constant 0 : i32
    %184 = tpu.memref_slice %arg2[%84, %c0_i32_98] : memref<50x32xf32, #tpu.memory_space<any>> -> memref<1x32xf32, #tpu.memory_space<any>>
    %185 = tpu.memref_squeeze %184 : memref<1x32xf32, #tpu.memory_space<any>> -> memref<32xf32, #tpu.memory_space<any>>
    %c0_i32_99 = arith.constant 0 : i32
    %186 = tpu.memref_slice %arg3[%c12_i32_96, %c0_i32_99] : memref<16x32xf32, #tpu.memory_space<vmem>> -> memref<1x32xf32, #tpu.memory_space<vmem>>
    %187 = tpu.memref_squeeze %186 : memref<1x32xf32, #tpu.memory_space<vmem>> -> memref<32xf32, #tpu.memory_space<vmem>>
    %188 = tpu.memref_slice %arg4[%c12_i32_97] : memref<16x!tpu.dma_semaphore, #tpu.memory_space<semaphore_mem>> -> memref<1x!tpu.dma_semaphore, #tpu.memory_space<semaphore_mem>>
    %189 = tpu.memref_squeeze %188 : memref<1x!tpu.dma_semaphore, #tpu.memory_space<semaphore_mem>> -> memref<!tpu.dma_semaphore, #tpu.memory_space<semaphore_mem>>
    tpu.wait_dma2 semaphore(%189 : memref<!tpu.dma_semaphore, #tpu.memory_space<semaphore_mem>>) src(%185 : memref<32xf32, #tpu.memory_space<any>>) dst(%187 : memref<32xf32, #tpu.memory_space<vmem>>)
    %c13_i32_100 = arith.constant 13 : i32
    %c13_i32_101 = arith.constant 13 : i32
    %c0_i32_102 = arith.constant 0 : i32
    %190 = tpu.memref_slice %arg2[%91, %c0_i32_102] : memref<50x32xf32, #tpu.memory_space<any>> -> memref<1x32xf32, #tpu.memory_space<any>>
    %191 = tpu.memref_squeeze %190 : memref<1x32xf32, #tpu.memory_space<any>> -> memref<32xf32, #tpu.memory_space<any>>
    %c0_i32_103 = arith.constant 0 : i32
    %192 = tpu.memref_slice %arg3[%c13_i32_100, %c0_i32_103] : memref<16x32xf32, #tpu.memory_space<vmem>> -> memref<1x32xf32, #tpu.memory_space<vmem>>
    %193 = tpu.memref_squeeze %192 : memref<1x32xf32, #tpu.memory_space<vmem>> -> memref<32xf32, #tpu.memory_space<vmem>>
    %194 = tpu.memref_slice %arg4[%c13_i32_101] : memref<16x!tpu.dma_semaphore, #tpu.memory_space<semaphore_mem>> -> memref<1x!tpu.dma_semaphore, #tpu.memory_space<semaphore_mem>>
    %195 = tpu.memref_squeeze %194 : memref<1x!tpu.dma_semaphore, #tpu.memory_space<semaphore_mem>> -> memref<!tpu.dma_semaphore, #tpu.memory_space<semaphore_mem>>
    tpu.wait_dma2 semaphore(%195 : memref<!tpu.dma_semaphore, #tpu.memory_space<semaphore_mem>>) src(%191 : memref<32xf32, #tpu.memory_space<any>>) dst(%193 : memref<32xf32, #tpu.memory_space<vmem>>)
    %c14_i32_104 = arith.constant 14 : i32
    %c14_i32_105 = arith.constant 14 : i32
    %c0_i32_106 = arith.constant 0 : i32
    %196 = tpu.memref_slice %arg2[%98, %c0_i32_106] : memref<50x32xf32, #tpu.memory_space<any>> -> memref<1x32xf32, #tpu.memory_space<any>>
    %197 = tpu.memref_squeeze %196 : memref<1x32xf32, #tpu.memory_space<any>> -> memref<32xf32, #tpu.memory_space<any>>
    %c0_i32_107 = arith.constant 0 : i32
    %198 = tpu.memref_slice %arg3[%c14_i32_104, %c0_i32_107] : memref<16x32xf32, #tpu.memory_space<vmem>> -> memref<1x32xf32, #tpu.memory_space<vmem>>
    %199 = tpu.memref_squeeze %198 : memref<1x32xf32, #tpu.memory_space<vmem>> -> memref<32xf32, #tpu.memory_space<vmem>>
    %200 = tpu.memref_slice %arg4[%c14_i32_105] : memref<16x!tpu.dma_semaphore, #tpu.memory_space<semaphore_mem>> -> memref<1x!tpu.dma_semaphore, #tpu.memory_space<semaphore_mem>>
    %201 = tpu.memref_squeeze %200 : memref<1x!tpu.dma_semaphore, #tpu.memory_space<semaphore_mem>> -> memref<!tpu.dma_semaphore, #tpu.memory_space<semaphore_mem>>
    tpu.wait_dma2 semaphore(%201 : memref<!tpu.dma_semaphore, #tpu.memory_space<semaphore_mem>>) src(%197 : memref<32xf32, #tpu.memory_space<any>>) dst(%199 : memref<32xf32, #tpu.memory_space<vmem>>)
    %c15_i32_108 = arith.constant 15 : i32
    %c15_i32_109 = arith.constant 15 : i32
    %c0_i32_110 = arith.constant 0 : i32
    %202 = tpu.memref_slice %arg2[%105, %c0_i32_110] : memref<50x32xf32, #tpu.memory_space<any>> -> memref<1x32xf32, #tpu.memory_space<any>>
    %203 = tpu.memref_squeeze %202 : memref<1x32xf32, #tpu.memory_space<any>> -> memref<32xf32, #tpu.memory_space<any>>
    %c0_i32_111 = arith.constant 0 : i32
    %204 = tpu.memref_slice %arg3[%c15_i32_108, %c0_i32_111] : memref<16x32xf32, #tpu.memory_space<vmem>> -> memref<1x32xf32, #tpu.memory_space<vmem>>
    %205 = tpu.memref_squeeze %204 : memref<1x32xf32, #tpu.memory_space<vmem>> -> memref<32xf32, #tpu.memory_space<vmem>>
    %206 = tpu.memref_slice %arg4[%c15_i32_109] : memref<16x!tpu.dma_semaphore, #tpu.memory_space<semaphore_mem>> -> memref<1x!tpu.dma_semaphore, #tpu.memory_space<semaphore_mem>>
    %207 = tpu.memref_squeeze %206 : memref<1x!tpu.dma_semaphore, #tpu.memory_space<semaphore_mem>> -> memref<!tpu.dma_semaphore, #tpu.memory_space<semaphore_mem>>
    tpu.wait_dma2 semaphore(%207 : memref<!tpu.dma_semaphore, #tpu.memory_space<semaphore_mem>>) src(%203 : memref<32xf32, #tpu.memory_space<any>>) dst(%205 : memref<32xf32, #tpu.memory_space<vmem>>)
    return
  }
  func.func @transform_1(%arg0: i32, %arg1: memref<16xi32, #tpu.memory_space<smem>>) -> (i32, i32) {
    %c0_i32 = arith.constant 0 : i32
    %c0_i32_0 = arith.constant 0 : i32
    %c0_i32_1 = arith.constant 0 : i32
    return %c0_i32, %c0_i32_0 : i32, i32
  }
}

</mosaic_0001>

<llo_original>
// kernel: tpu_custom_call.1
$region0: #{tpu_custom_call.1}
  #allocation0 [shape = 'u32[]', space=smem, size = 0x4, offset = 0x4, fixed_abs, tag = 'smem constant byte address 0x4 - core index']
  #allocation1 [shape = 'u32[144,128]{1,0:T(1,128)}', space=vmem, size = 0x12000, scoped, tag = 'internal scratch']
  #allocation2 [shape = 's32[16]{0}', space=sflag, size = 0x40, scoped, tag = 'scratch operand']
  #allocation3 [shape = 's32[1]{0}', space=sflag, size = 0x4, scoped, tag = 'scoped memory for tpu_custom_call.1']
  #allocation4 [shape = 'u8[512]{0}', space=smem, size = 0x200, scoped, tag = 'prefetched SMEM operand 0']
  #allocation7 [shape = 's32[]', space=sflag, size = 0x4, offset = 0, fixed_abs, tag = 'sflag constant byte address 0x0 - dummy sync flag']
  #allocation8 [shape = 's32[]', space=sflag, size = 0x4, offset = 0, fixed_abs, tag = 'sflag constant byte address 0x0 - dummy sync flag']
  #allocation9 [shape = 's32[]', space=sflag, size = 0x4, offset = 0, fixed_abs, tag = 'sflag constant byte address 0x0 - dummy sync flag']
  #allocation10 [shape = 's32[]', space=sflag, size = 0x4, offset = 0, fixed_abs, tag = 'sflag constant byte address 0x0 - dummy sync flag']
  #allocation11 [shape = 's32[]', space=sflag, size = 0x4, offset = 0, fixed_abs, tag = 'sflag constant byte address 0x0 - dummy sync flag']
  #allocation12 [shape = 's32[]', space=sflag, size = 0x4, offset = 0, fixed_abs, tag = 'sflag constant byte address 0x0 - dummy sync flag']
  #allocation13 [shape = 's32[]', space=sflag, size = 0x4, offset = 0, fixed_abs, tag = 'sflag constant byte address 0x0 - dummy sync flag']
  #allocation14 [shape = 's32[]', space=sflag, size = 0x4, offset = 0, fixed_abs, tag = 'sflag constant byte address 0x0 - dummy sync flag']
  #allocation15 [shape = 's32[]', space=sflag, size = 0x4, offset = 0, fixed_abs, tag = 'sflag constant byte address 0x0 - dummy sync flag']
  #allocation16 [shape = 's32[]', space=sflag, size = 0x4, offset = 0, fixed_abs, tag = 'sflag constant byte address 0x0 - dummy sync flag']
  #allocation17 [shape = 's32[]', space=sflag, size = 0x4, offset = 0, fixed_abs, tag = 'sflag constant byte address 0x0 - dummy sync flag']
  #allocation18 [shape = 's32[]', space=sflag, size = 0x4, offset = 0, fixed_abs, tag = 'sflag constant byte address 0x0 - dummy sync flag']
  #allocation19 [shape = 's32[]', space=sflag, size = 0x4, offset = 0, fixed_abs, tag = 'sflag constant byte address 0x0 - dummy sync flag']
  #allocation20 [shape = 's32[]', space=sflag, size = 0x4, offset = 0, fixed_abs, tag = 'sflag constant byte address 0x0 - dummy sync flag']
  #allocation21 [shape = 's32[]', space=sflag, size = 0x4, offset = 0, fixed_abs, tag = 'sflag constant byte address 0x0 - dummy sync flag']
  #allocation22 [shape = 's32[]', space=sflag, size = 0x4, offset = 0, fixed_abs, tag = 'sflag constant byte address 0x0 - dummy sync flag']
  %s0 = inlined_call_operand.vmem [shape: s32[16], index: 0, kind: input, shape index: {}]
  %s1 = inlined_call_operand.vmem [shape: f32[50,32], index: 1, kind: input, shape index: {}]
  %s2 = inlined_call_operand.hbm [shape: f32[16,32], index: 2, kind: output, shape index: {}]
  %s3 = sld [smem:[#allocation0]]
  $region490: #{tpu_custom_call.1} parent=0
    _
  %s5 = ssub.s32 1, %s3
  %s6 = scalar_select 0, %s5, %s3
  %s7 = sshll.u32 %s0, 4
  %s8 = int_to_ptr.vmem [resolvable:$true] %s7
  %10 = dma.vmem_to_smem %s8, 16, [#allocation4], [#allocation3]
  %11 = dma.done [#allocation3], 16
  %12 = sfence
  $region1: #{tpu_custom_call.1} parent=0
    #allocation5 [shape = 'u8[8192]{0}', space=vmem, size = 0x2000, scoped, tag = 'output window, operand 0, single buffered']
    #allocation6 [shape = 's32[1]{0}', space=sflag, size = 0x4, scoped, tag = 'scoped memory for tpu_custom_call.1']
    %13 = vsyncpa [#allocation6], 0
    %s14 = sld [smem:[#allocation4]]
    %s15 = scalar_lea.vmem %s1, %s14
    %p17 = scmp.lt.u32.totalorder 1, 8
    %p18 = pneg %p17
    // Predicated region
    $region2: #{tpu_custom_call.1} parent=1 // pred_check
      _
    $region3: #{tpu_custom_call.1} parent=1 // pred_check_branch
      %20 = sbr.rel (%p17) target = $region5
    $region4: #{tpu_custom_call.1} parent=1 // pred_region
      %s35 = sand.u32 1, 7
      %p36 = scmp.eq.s32.totalorder %s35, 0
      %p37 = pneg %p36
      // Predicated region
      $region17: #{tpu_custom_call.1} parent=4 // pred_check
        _
      $region18: #{tpu_custom_call.1} parent=4 // pred_check_branch
        %39 = sbr.rel (%p36) target = $region20
      $region19: #{tpu_custom_call.1} parent=4 // pred_region
        %s40 = sand.u32 1, 7
        %s41 = ssub.s32 1, %s40
        %s42 = scalar_lea.vmem %s15, %s41
        %s43 = ssub.s32 1, %s40
        %s44 = scalar_lea.vmem [#allocation5], %s43
        %s45 = sshllo.u32 0, %s40
        loop: start=0, step=1, limit=1
        $region21: #{tpu_custom_call.1} parent=19 // loop_pre_header
          _
        $region22: #{tpu_custom_call.1} parent=19 // loop_header
          %s47 = sphi 0, %s51
          %p48 = scmp.ge.s32.totalorder %s47, 1
          %s52 = sphi %s42, %s42
          %s53 = sphi %s44, %s44
        $region23: #{tpu_custom_call.1} parent=19 // loop_header_branch
          %50 = sbr.rel (%p48) target = $region27
        $region24: #{tpu_custom_call.1} parent=19 // loop_body
          %v54 = vld [vmem:[%s52] sm:%s45]
          %55 = vst [vmem:[%s53] sm:%s45] %v54
        $region25: #{tpu_custom_call.1} parent=19 // loop_footer
          %s51 = sadd.s32 1, %s47
        $region26: #{tpu_custom_call.1} parent=19 // loop_footer_branch
          %46 = sbr.rel target = $region22
        $region27: #{tpu_custom_call.1} parent=19 // loop_exit
          _
      $region20: #{tpu_custom_call.1} parent=4 // pred_fallthru
        _
    $region5: #{tpu_custom_call.1} parent=1 // pred_fallthru
      _
    // Predicated region
    $region6: #{tpu_custom_call.1} parent=1 // pred_check
      %p21 = pneg %p17
    $region7: #{tpu_custom_call.1} parent=1 // pred_check_branch
      %23 = sbr.rel (%p21) target = $region9
    $region8: #{tpu_custom_call.1} parent=1 // pred_region
      %s24 = sshllo.u32 0, 1
      loop: start=0, step=1, limit=1
      $region10: #{tpu_custom_call.1} parent=8 // loop_pre_header
        _
      $region11: #{tpu_custom_call.1} parent=8 // loop_header
        %s26 = sphi 0, %s30
        %p27 = scmp.ge.s32.totalorder %s26, 1
        %s31 = sphi %s15, %s15
        %s32 = sphi [#allocation5], [#allocation5]
      $region12: #{tpu_custom_call.1} parent=8 // loop_header_branch
        %29 = sbr.rel (%p27) target = $region16
      $region13: #{tpu_custom_call.1} parent=8 // loop_body
        %v33 = vld [vmem:[%s31] sm:%s24]
        %34 = vst [vmem:[%s32] sm:%s24] %v33
      $region14: #{tpu_custom_call.1} parent=8 // loop_footer
        %s30 = sadd.s32 1, %s26
      $region15: #{tpu_custom_call.1} parent=8 // loop_footer_branch
        %25 = sbr.rel target = $region11
      $region16: #{tpu_custom_call.1} parent=8 // loop_exit
        _
    $region9: #{tpu_custom_call.1} parent=1 // pred_fallthru
      _
    // Predicated region
    $region28: #{tpu_custom_call.1} parent=1 // pred_check
      _
    $region29: #{tpu_custom_call.1} parent=1 // pred_check_branch
      %58 = sbr.rel (0) target = $region31
    $region30: #{tpu_custom_call.1} parent=1 // pred_region
      %59 = vsyncadd [#allocation2], 16
    $region31: #{tpu_custom_call.1} parent=1 // pred_fallthru
      _
    %s60 = sld [smem:[#allocation4 + $0x1]]
    %s61 = scalar_lea.vmem %s1, %s60
    %s62 = scalar_lea.vmem [#allocation5], 1
    %s63 = scalar_lea.sflag [#allocation2], 1
    %p65 = scmp.lt.u32.totalorder 1, 8
    %p66 = pneg %p65
    // Predicated region
    $region32: #{tpu_custom_call.1} parent=1 // pred_check
      _
    $region33: #{tpu_custom_call.1} parent=1 // pred_check_branch
      %68 = sbr.rel (%p65) target = $region35
    $region34: #{tpu_custom_call.1} parent=1 // pred_region
      %s83 = sand.u32 1, 7
      %p84 = scmp.eq.s32.totalorder %s83, 0
      %p85 = pneg %p84
      // Predicated region
      $region47: #{tpu_custom_call.1} parent=34 // pred_check
        _
      $region48: #{tpu_custom_call.1} parent=34 // pred_check_branch
        %87 = sbr.rel (%p84) target = $region50
      $region49: #{tpu_custom_call.1} parent=34 // pred_region
        %s88 = sand.u32 1, 7
        %s89 = ssub.s32 1, %s88
        %s90 = scalar_lea.vmem %s61, %s89
        %s91 = ssub.s32 1, %s88
        %s92 = scalar_lea.vmem %s62, %s91 [#allocation5]
        %s93 = sshllo.u32 0, %s88
        loop: start=0, step=1, limit=1
        $region51: #{tpu_custom_call.1} parent=49 // loop_pre_header
          _
        $region52: #{tpu_custom_call.1} parent=49 // loop_header
          %s95 = sphi 0, %s99
          %p96 = scmp.ge.s32.totalorder %s95, 1
          %s100 = sphi %s90, %s90
          %s101 = sphi %s92, %s92
        $region53: #{tpu_custom_call.1} parent=49 // loop_header_branch
          %98 = sbr.rel (%p96) target = $region57
        $region54: #{tpu_custom_call.1} parent=49 // loop_body
          %v102 = vld [vmem:[%s100] sm:%s93]
          %103 = vst [vmem:[%s101] sm:%s93] %v102
        $region55: #{tpu_custom_call.1} parent=49 // loop_footer
          %s99 = sadd.s32 1, %s95
        $region56: #{tpu_custom_call.1} parent=49 // loop_footer_branch
          %94 = sbr.rel target = $region52
        $region57: #{tpu_custom_call.1} parent=49 // loop_exit
          _
      $region50: #{tpu_custom_call.1} parent=34 // pred_fallthru
        _
    $region35: #{tpu_custom_call.1} parent=1 // pred_fallthru
      _
    // Predicated region
    $region36: #{tpu_custom_call.1} parent=1 // pred_check
      %p69 = pneg %p65
    $region37: #{tpu_custom_call.1} parent=1 // pred_check_branch
      %71 = sbr.rel (%p69) target = $region39
    $region38: #{tpu_custom_call.1} parent=1 // pred_region
      %s72 = sshllo.u32 0, 1
      loop: start=0, step=1, limit=1
      $region40: #{tpu_custom_call.1} parent=38 // loop_pre_header
        _
      $region41: #{tpu_custom_call.1} parent=38 // loop_header
        %s74 = sphi 0, %s78
        %p75 = scmp.ge.s32.totalorder %s74, 1
        %s79 = sphi %s61, %s61
        %s80 = sphi %s62, %s62
      $region42: #{tpu_custom_call.1} parent=38 // loop_header_branch
        %77 = sbr.rel (%p75) target = $region46
      $region43: #{tpu_custom_call.1} parent=38 // loop_body
        %v81 = vld [vmem:[%s79] sm:%s72]
        %82 = vst [vmem:[%s80] sm:%s72] %v81
      $region44: #{tpu_custom_call.1} parent=38 // loop_footer
        %s78 = sadd.s32 1, %s74
      $region45: #{tpu_custom_call.1} parent=38 // loop_footer_branch
        %73 = sbr.rel target = $region41
      $region46: #{tpu_custom_call.1} parent=38 // loop_exit
        _
    $region39: #{tpu_custom_call.1} parent=1 // pred_fallthru
      _
    // Predicated region
    $region58: #{tpu_custom_call.1} parent=1 // pred_check
      _
    $region59: #{tpu_custom_call.1} parent=1 // pred_check_branch
      %106 = sbr.rel (0) target = $region61
    $region60: #{tpu_custom_call.1} parent=1 // pred_region
      %107 = vsyncadd %s63, 16
    $region61: #{tpu_custom_call.1} parent=1 // pred_fallthru
      _
    %s108 = sld [smem:[#allocation4 + $0x2]]
    %s109 = scalar_lea.vmem %s1, %s108
    %s110 = scalar_lea.vmem [#allocation5], 2
    %s111 = scalar_lea.sflag [#allocation2], 2
    %p113 = scmp.lt.u32.totalorder 1, 8
    %p114 = pneg %p113
    // Predicated region
    $region62: #{tpu_custom_call.1} parent=1 // pred_check
      _
    $region63: #{tpu_custom_call.1} parent=1 // pred_check_branch
      %116 = sbr.rel (%p113) target = $region65
    $region64: #{tpu_custom_call.1} parent=1 // pred_region
      %s131 = sand.u32 1, 7
      %p132 = scmp.eq.s32.totalorder %s131, 0
      %p133 = pneg %p132
      // Predicated region
      $region77: #{tpu_custom_call.1} parent=64 // pred_check
        _
      $region78: #{tpu_custom_call.1} parent=64 // pred_check_branch
        %135 = sbr.rel (%p132) target = $region80
      $region79: #{tpu_custom_call.1} parent=64 // pred_region
        %s136 = sand.u32 1, 7
        %s137 = ssub.s32 1, %s136
        %s138 = scalar_lea.vmem %s109, %s137
        %s139 = ssub.s32 1, %s136
        %s140 = scalar_lea.vmem %s110, %s139 [#allocation5]
        %s141 = sshllo.u32 0, %s136
        loop: start=0, step=1, limit=1
        $region81: #{tpu_custom_call.1} parent=79 // loop_pre_header
          _
        $region82: #{tpu_custom_call.1} parent=79 // loop_header
          %s143 = sphi 0, %s147
          %p144 = scmp.ge.s32.totalorder %s143, 1
          %s148 = sphi %s138, %s138
          %s149 = sphi %s140, %s140
        $region83: #{tpu_custom_call.1} parent=79 // loop_header_branch
          %146 = sbr.rel (%p144) target = $region87
        $region84: #{tpu_custom_call.1} parent=79 // loop_body
          %v150 = vld [vmem:[%s148] sm:%s141]
          %151 = vst [vmem:[%s149] sm:%s141] %v150
        $region85: #{tpu_custom_call.1} parent=79 // loop_footer
          %s147 = sadd.s32 1, %s143
        $region86: #{tpu_custom_call.1} parent=79 // loop_footer_branch
          %142 = sbr.rel target = $region82
        $region87: #{tpu_custom_call.1} parent=79 // loop_exit
          _
      $region80: #{tpu_custom_call.1} parent=64 // pred_fallthru
        _
    $region65: #{tpu_custom_call.1} parent=1 // pred_fallthru
      _
    // Predicated region
    $region66: #{tpu_custom_call.1} parent=1 // pred_check
      %p117 = pneg %p113
    $region67: #{tpu_custom_call.1} parent=1 // pred_check_branch
      %119 = sbr.rel (%p117) target = $region69
    $region68: #{tpu_custom_call.1} parent=1 // pred_region
      %s120 = sshllo.u32 0, 1
      loop: start=0, step=1, limit=1
      $region70: #{tpu_custom_call.1} parent=68 // loop_pre_header
        _
      $region71: #{tpu_custom_call.1} parent=68 // loop_header
        %s122 = sphi 0, %s126
        %p123 = scmp.ge.s32.totalorder %s122, 1
        %s127 = sphi %s109, %s109
        %s128 = sphi %s110, %s110
      $region72: #{tpu_custom_call.1} parent=68 // loop_header_branch
        %125 = sbr.rel (%p123) target = $region76
      $region73: #{tpu_custom_call.1} parent=68 // loop_body
        %v129 = vld [vmem:[%s127] sm:%s120]
        %130 = vst [vmem:[%s128] sm:%s120] %v129
      $region74: #{tpu_custom_call.1} parent=68 // loop_footer
        %s126 = sadd.s32 1, %s122
      $region75: #{tpu_custom_call.1} parent=68 // loop_footer_branch
        %121 = sbr.rel target = $region71
      $region76: #{tpu_custom_call.1} parent=68 // loop_exit
        _
    $region69: #{tpu_custom_call.1} parent=1 // pred_fallthru
      _
    // Predicated region
    $region88: #{tpu_custom_call.1} parent=1 // pred_check
      _
    $region89: #{tpu_custom_call.1} parent=1 // pred_check_branch
      %154 = sbr.rel (0) target = $region91
    $region90: #{tpu_custom_call.1} parent=1 // pred_region
      %155 = vsyncadd %s111, 16
    $region91: #{tpu_custom_call.1} parent=1 // pred_fallthru
      _
    %s156 = sld [smem:[#allocation4 + $0x3]]
    %s157 = scalar_lea.vmem %s1, %s156
    %s158 = scalar_lea.vmem [#allocation5], 3
    %s159 = scalar_lea.sflag [#allocation2], 3
    %p161 = scmp.lt.u32.totalorder 1, 8
    %p162 = pneg %p161
    // Predicated region
    $region92: #{tpu_custom_call.1} parent=1 // pred_check
      _
    $region93: #{tpu_custom_call.1} parent=1 // pred_check_branch
      %164 = sbr.rel (%p161) target = $region95
    $region94: #{tpu_custom_call.1} parent=1 // pred_region
      %s179 = sand.u32 1, 7
      %p180 = scmp.eq.s32.totalorder %s179, 0
      %p181 = pneg %p180
      // Predicated region
      $region107: #{tpu_custom_call.1} parent=94 // pred_check
        _
      $region108: #{tpu_custom_call.1} parent=94 // pred_check_branch
        %183 = sbr.rel (%p180) target = $region110
      $region109: #{tpu_custom_call.1} parent=94 // pred_region
        %s184 = sand.u32 1, 7
        %s185 = ssub.s32 1, %s184
        %s186 = scalar_lea.vmem %s157, %s185
        %s187 = ssub.s32 1, %s184
        %s188 = scalar_lea.vmem %s158, %s187 [#allocation5]
        %s189 = sshllo.u32 0, %s184
        loop: start=0, step=1, limit=1
        $region111: #{tpu_custom_call.1} parent=109 // loop_pre_header
          _
        $region112: #{tpu_custom_call.1} parent=109 // loop_header
          %s191 = sphi 0, %s195
          %p192 = scmp.ge.s32.totalorder %s191, 1
          %s196 = sphi %s186, %s186
          %s197 = sphi %s188, %s188
        $region113: #{tpu_custom_call.1} parent=109 // loop_header_branch
          %194 = sbr.rel (%p192) target = $region117
        $region114: #{tpu_custom_call.1} parent=109 // loop_body
          %v198 = vld [vmem:[%s196] sm:%s189]
          %199 = vst [vmem:[%s197] sm:%s189] %v198
        $region115: #{tpu_custom_call.1} parent=109 // loop_footer
          %s195 = sadd.s32 1, %s191
        $region116: #{tpu_custom_call.1} parent=109 // loop_footer_branch
          %190 = sbr.rel target = $region112
        $region117: #{tpu_custom_call.1} parent=109 // loop_exit
          _
      $region110: #{tpu_custom_call.1} parent=94 // pred_fallthru
        _
    $region95: #{tpu_custom_call.1} parent=1 // pred_fallthru
      _
    // Predicated region
    $region96: #{tpu_custom_call.1} parent=1 // pred_check
      %p165 = pneg %p161
    $region97: #{tpu_custom_call.1} parent=1 // pred_check_branch
      %167 = sbr.rel (%p165) target = $region99
    $region98: #{tpu_custom_call.1} parent=1 // pred_region
      %s168 = sshllo.u32 0, 1
      loop: start=0, step=1, limit=1
      $region100: #{tpu_custom_call.1} parent=98 // loop_pre_header
        _
      $region101: #{tpu_custom_call.1} parent=98 // loop_header
        %s170 = sphi 0, %s174
        %p171 = scmp.ge.s32.totalorder %s170, 1
        %s175 = sphi %s157, %s157
        %s176 = sphi %s158, %s158
      $region102: #{tpu_custom_call.1} parent=98 // loop_header_branch
        %173 = sbr.rel (%p171) target = $region106
      $region103: #{tpu_custom_call.1} parent=98 // loop_body
        %v177 = vld [vmem:[%s175] sm:%s168]
        %178 = vst [vmem:[%s176] sm:%s168] %v177
      $region104: #{tpu_custom_call.1} parent=98 // loop_footer
        %s174 = sadd.s32 1, %s170
      $region105: #{tpu_custom_call.1} parent=98 // loop_footer_branch
        %169 = sbr.rel target = $region101
      $region106: #{tpu_custom_call.1} parent=98 // loop_exit
        _
    $region99: #{tpu_custom_call.1} parent=1 // pred_fallthru
      _
    // Predicated region
    $region118: #{tpu_custom_call.1} parent=1 // pred_check
      _
    $region119: #{tpu_custom_call.1} parent=1 // pred_check_branch
      %202 = sbr.rel (0) target = $region121
    $region120: #{tpu_custom_call.1} parent=1 // pred_region
      %203 = vsyncadd %s159, 16
    $region121: #{tpu_custom_call.1} parent=1 // pred_fallthru
      _
    %s204 = sld [smem:[#allocation4 + $0x4]]
    %s205 = scalar_lea.vmem %s1, %s204
    %s206 = scalar_lea.vmem [#allocation5], 4
    %s207 = scalar_lea.sflag [#allocation2], 4
    %p209 = scmp.lt.u32.totalorder 1, 8
    %p210 = pneg %p209
    // Predicated region
    $region122: #{tpu_custom_call.1} parent=1 // pred_check
      _
    $region123: #{tpu_custom_call.1} parent=1 // pred_check_branch
      %212 = sbr.rel (%p209) target = $region125
    $region124: #{tpu_custom_call.1} parent=1 // pred_region
      %s227 = sand.u32 1, 7
      %p228 = scmp.eq.s32.totalorder %s227, 0
      %p229 = pneg %p228
      // Predicated region
      $region137: #{tpu_custom_call.1} parent=124 // pred_check
        _
      $region138: #{tpu_custom_call.1} parent=124 // pred_check_branch
        %231 = sbr.rel (%p228) target = $region140
      $region139: #{tpu_custom_call.1} parent=124 // pred_region
        %s232 = sand.u32 1, 7
        %s233 = ssub.s32 1, %s232
        %s234 = scalar_lea.vmem %s205, %s233
        %s235 = ssub.s32 1, %s232
        %s236 = scalar_lea.vmem %s206, %s235 [#allocation5]
        %s237 = sshllo.u32 0, %s232
        loop: start=0, step=1, limit=1
        $region141: #{tpu_custom_call.1} parent=139 // loop_pre_header
          _
        $region142: #{tpu_custom_call.1} parent=139 // loop_header
          %s239 = sphi 0, %s243
          %p240 = scmp.ge.s32.totalorder %s239, 1
          %s244 = sphi %s234, %s234
          %s245 = sphi %s236, %s236
        $region143: #{tpu_custom_call.1} parent=139 // loop_header_branch
          %242 = sbr.rel (%p240) target = $region147
        $region144: #{tpu_custom_call.1} parent=139 // loop_body
          %v246 = vld [vmem:[%s244] sm:%s237]
          %247 = vst [vmem:[%s245] sm:%s237] %v246
        $region145: #{tpu_custom_call.1} parent=139 // loop_footer
          %s243 = sadd.s32 1, %s239
        $region146: #{tpu_custom_call.1} parent=139 // loop_footer_branch
          %238 = sbr.rel target = $region142
        $region147: #{tpu_custom_call.1} parent=139 // loop_exit
          _
      $region140: #{tpu_custom_call.1} parent=124 // pred_fallthru
        _
    $region125: #{tpu_custom_call.1} parent=1 // pred_fallthru
      _
    // Predicated region
    $region126: #{tpu_custom_call.1} parent=1 // pred_check
      %p213 = pneg %p209
    $region127: #{tpu_custom_call.1} parent=1 // pred_check_branch
      %215 = sbr.rel (%p213) target = $region129
    $region128: #{tpu_custom_call.1} parent=1 // pred_region
      %s216 = sshllo.u32 0, 1
      loop: start=0, step=1, limit=1
      $region130: #{tpu_custom_call.1} parent=128 // loop_pre_header
        _
      $region131: #{tpu_custom_call.1} parent=128 // loop_header
        %s218 = sphi 0, %s222
        %p219 = scmp.ge.s32.totalorder %s218, 1
        %s223 = sphi %s205, %s205
        %s224 = sphi %s206, %s206
      $region132: #{tpu_custom_call.1} parent=128 // loop_header_branch
        %221 = sbr.rel (%p219) target = $region136
      $region133: #{tpu_custom_call.1} parent=128 // loop_body
        %v225 = vld [vmem:[%s223] sm:%s216]
        %226 = vst [vmem:[%s224] sm:%s216] %v225
      $region134: #{tpu_custom_call.1} parent=128 // loop_footer
        %s222 = sadd.s32 1, %s218
      $region135: #{tpu_custom_call.1} parent=128 // loop_footer_branch
        %217 = sbr.rel target = $region131
      $region136: #{tpu_custom_call.1} parent=128 // loop_exit
        _
    $region129: #{tpu_custom_call.1} parent=1 // pred_fallthru
      _
    // Predicated region
    $region148: #{tpu_custom_call.1} parent=1 // pred_check
      _
    $region149: #{tpu_custom_call.1} parent=1 // pred_check_branch
      %250 = sbr.rel (0) target = $region151
    $region150: #{tpu_custom_call.1} parent=1 // pred_region
      %251 = vsyncadd %s207, 16
    $region151: #{tpu_custom_call.1} parent=1 // pred_fallthru
      _
    %s252 = sld [smem:[#allocation4 + $0x5]]
    %s253 = scalar_lea.vmem %s1, %s252
    %s254 = scalar_lea.vmem [#allocation5], 5
    %s255 = scalar_lea.sflag [#allocation2], 5
    %p257 = scmp.lt.u32.totalorder 1, 8
    %p258 = pneg %p257
    // Predicated region
    $region152: #{tpu_custom_call.1} parent=1 // pred_check
      _
    $region153: #{tpu_custom_call.1} parent=1 // pred_check_branch
      %260 = sbr.rel (%p257) target = $region155
    $region154: #{tpu_custom_call.1} parent=1 // pred_region
      %s275 = sand.u32 1, 7
      %p276 = scmp.eq.s32.totalorder %s275, 0
      %p277 = pneg %p276
      // Predicated region
      $region167: #{tpu_custom_call.1} parent=154 // pred_check
        _
      $region168: #{tpu_custom_call.1} parent=154 // pred_check_branch
        %279 = sbr.rel (%p276) target = $region170
      $region169: #{tpu_custom_call.1} parent=154 // pred_region
        %s280 = sand.u32 1, 7
        %s281 = ssub.s32 1, %s280
        %s282 = scalar_lea.vmem %s253, %s281
        %s283 = ssub.s32 1, %s280
        %s284 = scalar_lea.vmem %s254, %s283 [#allocation5]
        %s285 = sshllo.u32 0, %s280
        loop: start=0, step=1, limit=1
        $region171: #{tpu_custom_call.1} parent=169 // loop_pre_header
          _
        $region172: #{tpu_custom_call.1} parent=169 // loop_header
          %s287 = sphi 0, %s291
          %p288 = scmp.ge.s32.totalorder %s287, 1
          %s292 = sphi %s282, %s282
          %s293 = sphi %s284, %s284
        $region173: #{tpu_custom_call.1} parent=169 // loop_header_branch
          %290 = sbr.rel (%p288) target = $region177
        $region174: #{tpu_custom_call.1} parent=169 // loop_body
          %v294 = vld [vmem:[%s292] sm:%s285]
          %295 = vst [vmem:[%s293] sm:%s285] %v294
        $region175: #{tpu_custom_call.1} parent=169 // loop_footer
          %s291 = sadd.s32 1, %s287
        $region176: #{tpu_custom_call.1} parent=169 // loop_footer_branch
          %286 = sbr.rel target = $region172
        $region177: #{tpu_custom_call.1} parent=169 // loop_exit
          _
      $region170: #{tpu_custom_call.1} parent=154 // pred_fallthru
        _
    $region155: #{tpu_custom_call.1} parent=1 // pred_fallthru
      _
    // Predicated region
    $region156: #{tpu_custom_call.1} parent=1 // pred_check
      %p261 = pneg %p257
    $region157: #{tpu_custom_call.1} parent=1 // pred_check_branch
      %263 = sbr.rel (%p261) target = $region159
    $region158: #{tpu_custom_call.1} parent=1 // pred_region
      %s264 = sshllo.u32 0, 1
      loop: start=0, step=1, limit=1
      $region160: #{tpu_custom_call.1} parent=158 // loop_pre_header
        _
      $region161: #{tpu_custom_call.1} parent=158 // loop_header
        %s266 = sphi 0, %s270
        %p267 = scmp.ge.s32.totalorder %s266, 1
        %s271 = sphi %s253, %s253
        %s272 = sphi %s254, %s254
      $region162: #{tpu_custom_call.1} parent=158 // loop_header_branch
        %269 = sbr.rel (%p267) target = $region166
      $region163: #{tpu_custom_call.1} parent=158 // loop_body
        %v273 = vld [vmem:[%s271] sm:%s264]
        %274 = vst [vmem:[%s272] sm:%s264] %v273
      $region164: #{tpu_custom_call.1} parent=158 // loop_footer
        %s270 = sadd.s32 1, %s266
      $region165: #{tpu_custom_call.1} parent=158 // loop_footer_branch
        %265 = sbr.rel target = $region161
      $region166: #{tpu_custom_call.1} parent=158 // loop_exit
        _
    $region159: #{tpu_custom_call.1} parent=1 // pred_fallthru
      _
    // Predicated region
    $region178: #{tpu_custom_call.1} parent=1 // pred_check
      _
    $region179: #{tpu_custom_call.1} parent=1 // pred_check_branch
      %298 = sbr.rel (0) target = $region181
    $region180: #{tpu_custom_call.1} parent=1 // pred_region
      %299 = vsyncadd %s255, 16
    $region181: #{tpu_custom_call.1} parent=1 // pred_fallthru
      _
    %s300 = sld [smem:[#allocation4 + $0x6]]
    %s301 = scalar_lea.vmem %s1, %s300
    %s302 = scalar_lea.vmem [#allocation5], 6
    %s303 = scalar_lea.sflag [#allocation2], 6
    %p305 = scmp.lt.u32.totalorder 1, 8
    %p306 = pneg %p305
    // Predicated region
    $region182: #{tpu_custom_call.1} parent=1 // pred_check
      _
    $region183: #{tpu_custom_call.1} parent=1 // pred_check_branch
      %308 = sbr.rel (%p305) target = $region185
    $region184: #{tpu_custom_call.1} parent=1 // pred_region
      %s323 = sand.u32 1, 7
      %p324 = scmp.eq.s32.totalorder %s323, 0
      %p325 = pneg %p324
      // Predicated region
      $region197: #{tpu_custom_call.1} parent=184 // pred_check
        _
      $region198: #{tpu_custom_call.1} parent=184 // pred_check_branch
        %327 = sbr.rel (%p324) target = $region200
      $region199: #{tpu_custom_call.1} parent=184 // pred_region
        %s328 = sand.u32 1, 7
        %s329 = ssub.s32 1, %s328
        %s330 = scalar_lea.vmem %s301, %s329
        %s331 = ssub.s32 1, %s328
        %s332 = scalar_lea.vmem %s302, %s331 [#allocation5]
        %s333 = sshllo.u32 0, %s328
        loop: start=0, step=1, limit=1
        $region201: #{tpu_custom_call.1} parent=199 // loop_pre_header
          _
        $region202: #{tpu_custom_call.1} parent=199 // loop_header
          %s335 = sphi 0, %s339
          %p336 = scmp.ge.s32.totalorder %s335, 1
          %s340 = sphi %s330, %s330
          %s341 = sphi %s332, %s332
        $region203: #{tpu_custom_call.1} parent=199 // loop_header_branch
          %338 = sbr.rel (%p336) target = $region207
        $region204: #{tpu_custom_call.1} parent=199 // loop_body
          %v342 = vld [vmem:[%s340] sm:%s333]
          %343 = vst [vmem:[%s341] sm:%s333] %v342
        $region205: #{tpu_custom_call.1} parent=199 // loop_footer
          %s339 = sadd.s32 1, %s335
        $region206: #{tpu_custom_call.1} parent=199 // loop_footer_branch
          %334 = sbr.rel target = $region202
        $region207: #{tpu_custom_call.1} parent=199 // loop_exit
          _
      $region200: #{tpu_custom_call.1} parent=184 // pred_fallthru
        _
    $region185: #{tpu_custom_call.1} parent=1 // pred_fallthru
      _
    // Predicated region
    $region186: #{tpu_custom_call.1} parent=1 // pred_check
      %p309 = pneg %p305
    $region187: #{tpu_custom_call.1} parent=1 // pred_check_branch
      %311 = sbr.rel (%p309) target = $region189
    $region188: #{tpu_custom_call.1} parent=1 // pred_region
      %s312 = sshllo.u32 0, 1
      loop: start=0, step=1, limit=1
      $region190: #{tpu_custom_call.1} parent=188 // loop_pre_header
        _
      $region191: #{tpu_custom_call.1} parent=188 // loop_header
        %s314 = sphi 0, %s318
        %p315 = scmp.ge.s32.totalorder %s314, 1
        %s319 = sphi %s301, %s301
        %s320 = sphi %s302, %s302
      $region192: #{tpu_custom_call.1} parent=188 // loop_header_branch
        %317 = sbr.rel (%p315) target = $region196
      $region193: #{tpu_custom_call.1} parent=188 // loop_body
        %v321 = vld [vmem:[%s319] sm:%s312]
        %322 = vst [vmem:[%s320] sm:%s312] %v321
      $region194: #{tpu_custom_call.1} parent=188 // loop_footer
        %s318 = sadd.s32 1, %s314
      $region195: #{tpu_custom_call.1} parent=188 // loop_footer_branch
        %313 = sbr.rel target = $region191
      $region196: #{tpu_custom_call.1} parent=188 // loop_exit
        _
    $region189: #{tpu_custom_call.1} parent=1 // pred_fallthru
      _
    // Predicated region
    $region208: #{tpu_custom_call.1} parent=1 // pred_check
      _
    $region209: #{tpu_custom_call.1} parent=1 // pred_check_branch
      %346 = sbr.rel (0) target = $region211
    $region210: #{tpu_custom_call.1} parent=1 // pred_region
      %347 = vsyncadd %s303, 16
    $region211: #{tpu_custom_call.1} parent=1 // pred_fallthru
      _
    %s348 = sld [smem:[#allocation4 + $0x7]]
    %s349 = scalar_lea.vmem %s1, %s348
    %s350 = scalar_lea.vmem [#allocation5], 7
    %s351 = scalar_lea.sflag [#allocation2], 7
    %p353 = scmp.lt.u32.totalorder 1, 8
    %p354 = pneg %p353
    // Predicated region
    $region212: #{tpu_custom_call.1} parent=1 // pred_check
      _
    $region213: #{tpu_custom_call.1} parent=1 // pred_check_branch
      %356 = sbr.rel (%p353) target = $region215
    $region214: #{tpu_custom_call.1} parent=1 // pred_region
      %s371 = sand.u32 1, 7
      %p372 = scmp.eq.s32.totalorder %s371, 0
      %p373 = pneg %p372
      // Predicated region
      $region227: #{tpu_custom_call.1} parent=214 // pred_check
        _
      $region228: #{tpu_custom_call.1} parent=214 // pred_check_branch
        %375 = sbr.rel (%p372) target = $region230
      $region229: #{tpu_custom_call.1} parent=214 // pred_region
        %s376 = sand.u32 1, 7
        %s377 = ssub.s32 1, %s376
        %s378 = scalar_lea.vmem %s349, %s377
        %s379 = ssub.s32 1, %s376
        %s380 = scalar_lea.vmem %s350, %s379 [#allocation5]
        %s381 = sshllo.u32 0, %s376
        loop: start=0, step=1, limit=1
        $region231: #{tpu_custom_call.1} parent=229 // loop_pre_header
          _
        $region232: #{tpu_custom_call.1} parent=229 // loop_header
          %s383 = sphi 0, %s387
          %p384 = scmp.ge.s32.totalorder %s383, 1
          %s388 = sphi %s378, %s378
          %s389 = sphi %s380, %s380
        $region233: #{tpu_custom_call.1} parent=229 // loop_header_branch
          %386 = sbr.rel (%p384) target = $region237
        $region234: #{tpu_custom_call.1} parent=229 // loop_body
          %v390 = vld [vmem:[%s388] sm:%s381]
          %391 = vst [vmem:[%s389] sm:%s381] %v390
        $region235: #{tpu_custom_call.1} parent=229 // loop_footer
          %s387 = sadd.s32 1, %s383
        $region236: #{tpu_custom_call.1} parent=229 // loop_footer_branch
          %382 = sbr.rel target = $region232
        $region237: #{tpu_custom_call.1} parent=229 // loop_exit
          _
      $region230: #{tpu_custom_call.1} parent=214 // pred_fallthru
        _
    $region215: #{tpu_custom_call.1} parent=1 // pred_fallthru
      _
    // Predicated region
    $region216: #{tpu_custom_call.1} parent=1 // pred_check
      %p357 = pneg %p353
    $region217: #{tpu_custom_call.1} parent=1 // pred_check_branch
      %359 = sbr.rel (%p357) target = $region219
    $region218: #{tpu_custom_call.1} parent=1 // pred_region
      %s360 = sshllo.u32 0, 1
      loop: start=0, step=1, limit=1
      $region220: #{tpu_custom_call.1} parent=218 // loop_pre_header
        _
      $region221: #{tpu_custom_call.1} parent=218 // loop_header
        %s362 = sphi 0, %s366
        %p363 = scmp.ge.s32.totalorder %s362, 1
        %s367 = sphi %s349, %s349
        %s368 = sphi %s350, %s350
      $region222: #{tpu_custom_call.1} parent=218 // loop_header_branch
        %365 = sbr.rel (%p363) target = $region226
      $region223: #{tpu_custom_call.1} parent=218 // loop_body
        %v369 = vld [vmem:[%s367] sm:%s360]
        %370 = vst [vmem:[%s368] sm:%s360] %v369
      $region224: #{tpu_custom_call.1} parent=218 // loop_footer
        %s366 = sadd.s32 1, %s362
      $region225: #{tpu_custom_call.1} parent=218 // loop_footer_branch
        %361 = sbr.rel target = $region221
      $region226: #{tpu_custom_call.1} parent=218 // loop_exit
        _
    $region219: #{tpu_custom_call.1} parent=1 // pred_fallthru
      _
    // Predicated region
    $region238: #{tpu_custom_call.1} parent=1 // pred_check
      _
    $region239: #{tpu_custom_call.1} parent=1 // pred_check_branch
      %394 = sbr.rel (0) target = $region241
    $region240: #{tpu_custom_call.1} parent=1 // pred_region
      %395 = vsyncadd %s351, 16
    $region241: #{tpu_custom_call.1} parent=1 // pred_fallthru
      _
    %s396 = sld [smem:[#allocation4 + $0x8]]
    %s397 = scalar_lea.vmem %s1, %s396
    %s398 = scalar_lea.vmem [#allocation5], 8
    %s399 = scalar_lea.sflag [#allocation2], 8
    %p401 = scmp.lt.u32.totalorder 1, 8
    %p402 = pneg %p401
    // Predicated region
    $region242: #{tpu_custom_call.1} parent=1 // pred_check
      _
    $region243: #{tpu_custom_call.1} parent=1 // pred_check_branch
      %404 = sbr.rel (%p401) target = $region245
    $region244: #{tpu_custom_call.1} parent=1 // pred_region
      %s419 = sand.u32 1, 7
      %p420 = scmp.eq.s32.totalorder %s419, 0
      %p421 = pneg %p420
      // Predicated region
      $region257: #{tpu_custom_call.1} parent=244 // pred_check
        _
      $region258: #{tpu_custom_call.1} parent=244 // pred_check_branch
        %423 = sbr.rel (%p420) target = $region260
      $region259: #{tpu_custom_call.1} parent=244 // pred_region
        %s424 = sand.u32 1, 7
        %s425 = ssub.s32 1, %s424
        %s426 = scalar_lea.vmem %s397, %s425
        %s427 = ssub.s32 1, %s424
        %s428 = scalar_lea.vmem %s398, %s427 [#allocation5]
        %s429 = sshllo.u32 0, %s424
        loop: start=0, step=1, limit=1
        $region261: #{tpu_custom_call.1} parent=259 // loop_pre_header
          _
        $region262: #{tpu_custom_call.1} parent=259 // loop_header
          %s431 = sphi 0, %s435
          %p432 = scmp.ge.s32.totalorder %s431, 1
          %s436 = sphi %s426, %s426
          %s437 = sphi %s428, %s428
        $region263: #{tpu_custom_call.1} parent=259 // loop_header_branch
          %434 = sbr.rel (%p432) target = $region267
        $region264: #{tpu_custom_call.1} parent=259 // loop_body
          %v438 = vld [vmem:[%s436] sm:%s429]
          %439 = vst [vmem:[%s437] sm:%s429] %v438
        $region265: #{tpu_custom_call.1} parent=259 // loop_footer
          %s435 = sadd.s32 1, %s431
        $region266: #{tpu_custom_call.1} parent=259 // loop_footer_branch
          %430 = sbr.rel target = $region262
        $region267: #{tpu_custom_call.1} parent=259 // loop_exit
          _
      $region260: #{tpu_custom_call.1} parent=244 // pred_fallthru
        _
    $region245: #{tpu_custom_call.1} parent=1 // pred_fallthru
      _
    // Predicated region
    $region246: #{tpu_custom_call.1} parent=1 // pred_check
      %p405 = pneg %p401
    $region247: #{tpu_custom_call.1} parent=1 // pred_check_branch
      %407 = sbr.rel (%p405) target = $region249
    $region248: #{tpu_custom_call.1} parent=1 // pred_region
      %s408 = sshllo.u32 0, 1
      loop: start=0, step=1, limit=1
      $region250: #{tpu_custom_call.1} parent=248 // loop_pre_header
        _
      $region251: #{tpu_custom_call.1} parent=248 // loop_header
        %s410 = sphi 0, %s414
        %p411 = scmp.ge.s32.totalorder %s410, 1
        %s415 = sphi %s397, %s397
        %s416 = sphi %s398, %s398
      $region252: #{tpu_custom_call.1} parent=248 // loop_header_branch
        %413 = sbr.rel (%p411) target = $region256
      $region253: #{tpu_custom_call.1} parent=248 // loop_body
        %v417 = vld [vmem:[%s415] sm:%s408]
        %418 = vst [vmem:[%s416] sm:%s408] %v417
      $region254: #{tpu_custom_call.1} parent=248 // loop_footer
        %s414 = sadd.s32 1, %s410
      $region255: #{tpu_custom_call.1} parent=248 // loop_footer_branch
        %409 = sbr.rel target = $region251
      $region256: #{tpu_custom_call.1} parent=248 // loop_exit
        _
    $region249: #{tpu_custom_call.1} parent=1 // pred_fallthru
      _
    // Predicated region
    $region268: #{tpu_custom_call.1} parent=1 // pred_check
      _
    $region269: #{tpu_custom_call.1} parent=1 // pred_check_branch
      %442 = sbr.rel (0) target = $region271
    $region270: #{tpu_custom_call.1} parent=1 // pred_region
      %443 = vsyncadd %s399, 16
    $region271: #{tpu_custom_call.1} parent=1 // pred_fallthru
      _
    %s444 = sld [smem:[#allocation4 + $0x9]]
    %s445 = scalar_lea.vmem %s1, %s444
    %s446 = scalar_lea.vmem [#allocation5], 9
    %s447 = scalar_lea.sflag [#allocation2], 9
    %p449 = scmp.lt.u32.totalorder 1, 8
    %p450 = pneg %p449
    // Predicated region
    $region272: #{tpu_custom_call.1} parent=1 // pred_check
      _
    $region273: #{tpu_custom_call.1} parent=1 // pred_check_branch
      %452 = sbr.rel (%p449) target = $region275
    $region274: #{tpu_custom_call.1} parent=1 // pred_region
      %s467 = sand.u32 1, 7
      %p468 = scmp.eq.s32.totalorder %s467, 0
      %p469 = pneg %p468
      // Predicated region
      $region287: #{tpu_custom_call.1} parent=274 // pred_check
        _
      $region288: #{tpu_custom_call.1} parent=274 // pred_check_branch
        %471 = sbr.rel (%p468) target = $region290
      $region289: #{tpu_custom_call.1} parent=274 // pred_region
        %s472 = sand.u32 1, 7
        %s473 = ssub.s32 1, %s472
        %s474 = scalar_lea.vmem %s445, %s473
        %s475 = ssub.s32 1, %s472
        %s476 = scalar_lea.vmem %s446, %s475 [#allocation5]
        %s477 = sshllo.u32 0, %s472
        loop: start=0, step=1, limit=1
        $region291: #{tpu_custom_call.1} parent=289 // loop_pre_header
          _
        $region292: #{tpu_custom_call.1} parent=289 // loop_header
          %s479 = sphi 0, %s483
          %p480 = scmp.ge.s32.totalorder %s479, 1
          %s484 = sphi %s474, %s474
          %s485 = sphi %s476, %s476
        $region293: #{tpu_custom_call.1} parent=289 // loop_header_branch
          %482 = sbr.rel (%p480) target = $region297
        $region294: #{tpu_custom_call.1} parent=289 // loop_body
          %v486 = vld [vmem:[%s484] sm:%s477]
          %487 = vst [vmem:[%s485] sm:%s477] %v486
        $region295: #{tpu_custom_call.1} parent=289 // loop_footer
          %s483 = sadd.s32 1, %s479
        $region296: #{tpu_custom_call.1} parent=289 // loop_footer_branch
          %478 = sbr.rel target = $region292
        $region297: #{tpu_custom_call.1} parent=289 // loop_exit
          _
      $region290: #{tpu_custom_call.1} parent=274 // pred_fallthru
        _
    $region275: #{tpu_custom_call.1} parent=1 // pred_fallthru
      _
    // Predicated region
    $region276: #{tpu_custom_call.1} parent=1 // pred_check
      %p453 = pneg %p449
    $region277: #{tpu_custom_call.1} parent=1 // pred_check_branch
      %455 = sbr.rel (%p453) target = $region279
    $region278: #{tpu_custom_call.1} parent=1 // pred_region
      %s456 = sshllo.u32 0, 1
      loop: start=0, step=1, limit=1
      $region280: #{tpu_custom_call.1} parent=278 // loop_pre_header
        _
      $region281: #{tpu_custom_call.1} parent=278 // loop_header
        %s458 = sphi 0, %s462
        %p459 = scmp.ge.s32.totalorder %s458, 1
        %s463 = sphi %s445, %s445
        %s464 = sphi %s446, %s446
      $region282: #{tpu_custom_call.1} parent=278 // loop_header_branch
        %461 = sbr.rel (%p459) target = $region286
      $region283: #{tpu_custom_call.1} parent=278 // loop_body
        %v465 = vld [vmem:[%s463] sm:%s456]
        %466 = vst [vmem:[%s464] sm:%s456] %v465
      $region284: #{tpu_custom_call.1} parent=278 // loop_footer
        %s462 = sadd.s32 1, %s458
      $region285: #{tpu_custom_call.1} parent=278 // loop_footer_branch
        %457 = sbr.rel target = $region281
      $region286: #{tpu_custom_call.1} parent=278 // loop_exit
        _
    $region279: #{tpu_custom_call.1} parent=1 // pred_fallthru
      _
    // Predicated region
    $region298: #{tpu_custom_call.1} parent=1 // pred_check
      _
    $region299: #{tpu_custom_call.1} parent=1 // pred_check_branch
      %490 = sbr.rel (0) target = $region301
    $region300: #{tpu_custom_call.1} parent=1 // pred_region
      %491 = vsyncadd %s447, 16
    $region301: #{tpu_custom_call.1} parent=1 // pred_fallthru
      _
    %s492 = sld [smem:[#allocation4 + $0xa]]
    %s493 = scalar_lea.vmem %s1, %s492
    %s494 = scalar_lea.vmem [#allocation5], 10
    %s495 = scalar_lea.sflag [#allocation2], 10
    %p497 = scmp.lt.u32.totalorder 1, 8
    %p498 = pneg %p497
    // Predicated region
    $region302: #{tpu_custom_call.1} parent=1 // pred_check
      _
    $region303: #{tpu_custom_call.1} parent=1 // pred_check_branch
      %500 = sbr.rel (%p497) target = $region305
    $region304: #{tpu_custom_call.1} parent=1 // pred_region
      %s515 = sand.u32 1, 7
      %p516 = scmp.eq.s32.totalorder %s515, 0
      %p517 = pneg %p516
      // Predicated region
      $region317: #{tpu_custom_call.1} parent=304 // pred_check
        _
      $region318: #{tpu_custom_call.1} parent=304 // pred_check_branch
        %519 = sbr.rel (%p516) target = $region320
      $region319: #{tpu_custom_call.1} parent=304 // pred_region
        %s520 = sand.u32 1, 7
        %s521 = ssub.s32 1, %s520
        %s522 = scalar_lea.vmem %s493, %s521
        %s523 = ssub.s32 1, %s520
        %s524 = scalar_lea.vmem %s494, %s523 [#allocation5]
        %s525 = sshllo.u32 0, %s520
        loop: start=0, step=1, limit=1
        $region321: #{tpu_custom_call.1} parent=319 // loop_pre_header
          _
        $region322: #{tpu_custom_call.1} parent=319 // loop_header
          %s527 = sphi 0, %s531
          %p528 = scmp.ge.s32.totalorder %s527, 1
          %s532 = sphi %s522, %s522
          %s533 = sphi %s524, %s524
        $region323: #{tpu_custom_call.1} parent=319 // loop_header_branch
          %530 = sbr.rel (%p528) target = $region327
        $region324: #{tpu_custom_call.1} parent=319 // loop_body
          %v534 = vld [vmem:[%s532] sm:%s525]
          %535 = vst [vmem:[%s533] sm:%s525] %v534
        $region325: #{tpu_custom_call.1} parent=319 // loop_footer
          %s531 = sadd.s32 1, %s527
        $region326: #{tpu_custom_call.1} parent=319 // loop_footer_branch
          %526 = sbr.rel target = $region322
        $region327: #{tpu_custom_call.1} parent=319 // loop_exit
          _
      $region320: #{tpu_custom_call.1} parent=304 // pred_fallthru
        _
    $region305: #{tpu_custom_call.1} parent=1 // pred_fallthru
      _
    // Predicated region
    $region306: #{tpu_custom_call.1} parent=1 // pred_check
      %p501 = pneg %p497
    $region307: #{tpu_custom_call.1} parent=1 // pred_check_branch
      %503 = sbr.rel (%p501) target = $region309
    $region308: #{tpu_custom_call.1} parent=1 // pred_region
      %s504 = sshllo.u32 0, 1
      loop: start=0, step=1, limit=1
      $region310: #{tpu_custom_call.1} parent=308 // loop_pre_header
        _
      $region311: #{tpu_custom_call.1} parent=308 // loop_header
        %s506 = sphi 0, %s510
        %p507 = scmp.ge.s32.totalorder %s506, 1
        %s511 = sphi %s493, %s493
        %s512 = sphi %s494, %s494
      $region312: #{tpu_custom_call.1} parent=308 // loop_header_branch
        %509 = sbr.rel (%p507) target = $region316
      $region313: #{tpu_custom_call.1} parent=308 // loop_body
        %v513 = vld [vmem:[%s511] sm:%s504]
        %514 = vst [vmem:[%s512] sm:%s504] %v513
      $region314: #{tpu_custom_call.1} parent=308 // loop_footer
        %s510 = sadd.s32 1, %s506
      $region315: #{tpu_custom_call.1} parent=308 // loop_footer_branch
        %505 = sbr.rel target = $region311
      $region316: #{tpu_custom_call.1} parent=308 // loop_exit
        _
    $region309: #{tpu_custom_call.1} parent=1 // pred_fallthru
      _
    // Predicated region
    $region328: #{tpu_custom_call.1} parent=1 // pred_check
      _
    $region329: #{tpu_custom_call.1} parent=1 // pred_check_branch
      %538 = sbr.rel (0) target = $region331
    $region330: #{tpu_custom_call.1} parent=1 // pred_region
      %539 = vsyncadd %s495, 16
    $region331: #{tpu_custom_call.1} parent=1 // pred_fallthru
      _
    %s540 = sld [smem:[#allocation4 + $0xb]]
    %s541 = scalar_lea.vmem %s1, %s540
    %s542 = scalar_lea.vmem [#allocation5], 11
    %s543 = scalar_lea.sflag [#allocation2], 11
    %p545 = scmp.lt.u32.totalorder 1, 8
    %p546 = pneg %p545
    // Predicated region
    $region332: #{tpu_custom_call.1} parent=1 // pred_check
      _
    $region333: #{tpu_custom_call.1} parent=1 // pred_check_branch
      %548 = sbr.rel (%p545) target = $region335
    $region334: #{tpu_custom_call.1} parent=1 // pred_region
      %s563 = sand.u32 1, 7
      %p564 = scmp.eq.s32.totalorder %s563, 0
      %p565 = pneg %p564
      // Predicated region
      $region347: #{tpu_custom_call.1} parent=334 // pred_check
        _
      $region348: #{tpu_custom_call.1} parent=334 // pred_check_branch
        %567 = sbr.rel (%p564) target = $region350
      $region349: #{tpu_custom_call.1} parent=334 // pred_region
        %s568 = sand.u32 1, 7
        %s569 = ssub.s32 1, %s568
        %s570 = scalar_lea.vmem %s541, %s569
        %s571 = ssub.s32 1, %s568
        %s572 = scalar_lea.vmem %s542, %s571 [#allocation5]
        %s573 = sshllo.u32 0, %s568
        loop: start=0, step=1, limit=1
        $region351: #{tpu_custom_call.1} parent=349 // loop_pre_header
          _
        $region352: #{tpu_custom_call.1} parent=349 // loop_header
          %s575 = sphi 0, %s579
          %p576 = scmp.ge.s32.totalorder %s575, 1
          %s580 = sphi %s570, %s570
          %s581 = sphi %s572, %s572
        $region353: #{tpu_custom_call.1} parent=349 // loop_header_branch
          %578 = sbr.rel (%p576) target = $region357
        $region354: #{tpu_custom_call.1} parent=349 // loop_body
          %v582 = vld [vmem:[%s580] sm:%s573]
          %583 = vst [vmem:[%s581] sm:%s573] %v582
        $region355: #{tpu_custom_call.1} parent=349 // loop_footer
          %s579 = sadd.s32 1, %s575
        $region356: #{tpu_custom_call.1} parent=349 // loop_footer_branch
          %574 = sbr.rel target = $region352
        $region357: #{tpu_custom_call.1} parent=349 // loop_exit
          _
      $region350: #{tpu_custom_call.1} parent=334 // pred_fallthru
        _
    $region335: #{tpu_custom_call.1} parent=1 // pred_fallthru
      _
    // Predicated region
    $region336: #{tpu_custom_call.1} parent=1 // pred_check
      %p549 = pneg %p545
    $region337: #{tpu_custom_call.1} parent=1 // pred_check_branch
      %551 = sbr.rel (%p549) target = $region339
    $region338: #{tpu_custom_call.1} parent=1 // pred_region
      %s552 = sshllo.u32 0, 1
      loop: start=0, step=1, limit=1
      $region340: #{tpu_custom_call.1} parent=338 // loop_pre_header
        _
      $region341: #{tpu_custom_call.1} parent=338 // loop_header
        %s554 = sphi 0, %s558
        %p555 = scmp.ge.s32.totalorder %s554, 1
        %s559 = sphi %s541, %s541
        %s560 = sphi %s542, %s542
      $region342: #{tpu_custom_call.1} parent=338 // loop_header_branch
        %557 = sbr.rel (%p555) target = $region346
      $region343: #{tpu_custom_call.1} parent=338 // loop_body
        %v561 = vld [vmem:[%s559] sm:%s552]
        %562 = vst [vmem:[%s560] sm:%s552] %v561
      $region344: #{tpu_custom_call.1} parent=338 // loop_footer
        %s558 = sadd.s32 1, %s554
      $region345: #{tpu_custom_call.1} parent=338 // loop_footer_branch
        %553 = sbr.rel target = $region341
      $region346: #{tpu_custom_call.1} parent=338 // loop_exit
        _
    $region339: #{tpu_custom_call.1} parent=1 // pred_fallthru
      _
    // Predicated region
    $region358: #{tpu_custom_call.1} parent=1 // pred_check
      _
    $region359: #{tpu_custom_call.1} parent=1 // pred_check_branch
      %586 = sbr.rel (0) target = $region361
    $region360: #{tpu_custom_call.1} parent=1 // pred_region
      %587 = vsyncadd %s543, 16
    $region361: #{tpu_custom_call.1} parent=1 // pred_fallthru
      _
    %s588 = sld [smem:[#allocation4 + $0xc]]
    %s589 = scalar_lea.vmem %s1, %s588
    %s590 = scalar_lea.vmem [#allocation5], 12
    %s591 = scalar_lea.sflag [#allocation2], 12
    %p593 = scmp.lt.u32.totalorder 1, 8
    %p594 = pneg %p593
    // Predicated region
    $region362: #{tpu_custom_call.1} parent=1 // pred_check
      _
    $region363: #{tpu_custom_call.1} parent=1 // pred_check_branch
      %596 = sbr.rel (%p593) target = $region365
    $region364: #{tpu_custom_call.1} parent=1 // pred_region
      %s611 = sand.u32 1, 7
      %p612 = scmp.eq.s32.totalorder %s611, 0
      %p613 = pneg %p612
      // Predicated region
      $region377: #{tpu_custom_call.1} parent=364 // pred_check
        _
      $region378: #{tpu_custom_call.1} parent=364 // pred_check_branch
        %615 = sbr.rel (%p612) target = $region380
      $region379: #{tpu_custom_call.1} parent=364 // pred_region
        %s616 = sand.u32 1, 7
        %s617 = ssub.s32 1, %s616
        %s618 = scalar_lea.vmem %s589, %s617
        %s619 = ssub.s32 1, %s616
        %s620 = scalar_lea.vmem %s590, %s619 [#allocation5]
        %s621 = sshllo.u32 0, %s616
        loop: start=0, step=1, limit=1
        $region381: #{tpu_custom_call.1} parent=379 // loop_pre_header
          _
        $region382: #{tpu_custom_call.1} parent=379 // loop_header
          %s623 = sphi 0, %s627
          %p624 = scmp.ge.s32.totalorder %s623, 1
          %s628 = sphi %s618, %s618
          %s629 = sphi %s620, %s620
        $region383: #{tpu_custom_call.1} parent=379 // loop_header_branch
          %626 = sbr.rel (%p624) target = $region387
        $region384: #{tpu_custom_call.1} parent=379 // loop_body
          %v630 = vld [vmem:[%s628] sm:%s621]
          %631 = vst [vmem:[%s629] sm:%s621] %v630
        $region385: #{tpu_custom_call.1} parent=379 // loop_footer
          %s627 = sadd.s32 1, %s623
        $region386: #{tpu_custom_call.1} parent=379 // loop_footer_branch
          %622 = sbr.rel target = $region382
        $region387: #{tpu_custom_call.1} parent=379 // loop_exit
          _
      $region380: #{tpu_custom_call.1} parent=364 // pred_fallthru
        _
    $region365: #{tpu_custom_call.1} parent=1 // pred_fallthru
      _
    // Predicated region
    $region366: #{tpu_custom_call.1} parent=1 // pred_check
      %p597 = pneg %p593
    $region367: #{tpu_custom_call.1} parent=1 // pred_check_branch
      %599 = sbr.rel (%p597) target = $region369
    $region368: #{tpu_custom_call.1} parent=1 // pred_region
      %s600 = sshllo.u32 0, 1
      loop: start=0, step=1, limit=1
      $region370: #{tpu_custom_call.1} parent=368 // loop_pre_header
        _
      $region371: #{tpu_custom_call.1} parent=368 // loop_header
        %s602 = sphi 0, %s606
        %p603 = scmp.ge.s32.totalorder %s602, 1
        %s607 = sphi %s589, %s589
        %s608 = sphi %s590, %s590
      $region372: #{tpu_custom_call.1} parent=368 // loop_header_branch
        %605 = sbr.rel (%p603) target = $region376
      $region373: #{tpu_custom_call.1} parent=368 // loop_body
        %v609 = vld [vmem:[%s607] sm:%s600]
        %610 = vst [vmem:[%s608] sm:%s600] %v609
      $region374: #{tpu_custom_call.1} parent=368 // loop_footer
        %s606 = sadd.s32 1, %s602
      $region375: #{tpu_custom_call.1} parent=368 // loop_footer_branch
        %601 = sbr.rel target = $region371
      $region376: #{tpu_custom_call.1} parent=368 // loop_exit
        _
    $region369: #{tpu_custom_call.1} parent=1 // pred_fallthru
      _
    // Predicated region
    $region388: #{tpu_custom_call.1} parent=1 // pred_check
      _
    $region389: #{tpu_custom_call.1} parent=1 // pred_check_branch
      %634 = sbr.rel (0) target = $region391
    $region390: #{tpu_custom_call.1} parent=1 // pred_region
      %635 = vsyncadd %s591, 16
    $region391: #{tpu_custom_call.1} parent=1 // pred_fallthru
      _
    %s636 = sld [smem:[#allocation4 + $0xd]]
    %s637 = scalar_lea.vmem %s1, %s636
    %s638 = scalar_lea.vmem [#allocation5], 13
    %s639 = scalar_lea.sflag [#allocation2], 13
    %p641 = scmp.lt.u32.totalorder 1, 8
    %p642 = pneg %p641
    // Predicated region
    $region392: #{tpu_custom_call.1} parent=1 // pred_check
      _
    $region393: #{tpu_custom_call.1} parent=1 // pred_check_branch
      %644 = sbr.rel (%p641) target = $region395
    $region394: #{tpu_custom_call.1} parent=1 // pred_region
      %s659 = sand.u32 1, 7
      %p660 = scmp.eq.s32.totalorder %s659, 0
      %p661 = pneg %p660
      // Predicated region
      $region407: #{tpu_custom_call.1} parent=394 // pred_check
        _
      $region408: #{tpu_custom_call.1} parent=394 // pred_check_branch
        %663 = sbr.rel (%p660) target = $region410
      $region409: #{tpu_custom_call.1} parent=394 // pred_region
        %s664 = sand.u32 1, 7
        %s665 = ssub.s32 1, %s664
        %s666 = scalar_lea.vmem %s637, %s665
        %s667 = ssub.s32 1, %s664
        %s668 = scalar_lea.vmem %s638, %s667 [#allocation5]
        %s669 = sshllo.u32 0, %s664
        loop: start=0, step=1, limit=1
        $region411: #{tpu_custom_call.1} parent=409 // loop_pre_header
          _
        $region412: #{tpu_custom_call.1} parent=409 // loop_header
          %s671 = sphi 0, %s675
          %p672 = scmp.ge.s32.totalorder %s671, 1
          %s676 = sphi %s666, %s666
          %s677 = sphi %s668, %s668
        $region413: #{tpu_custom_call.1} parent=409 // loop_header_branch
          %674 = sbr.rel (%p672) target = $region417
        $region414: #{tpu_custom_call.1} parent=409 // loop_body
          %v678 = vld [vmem:[%s676] sm:%s669]
          %679 = vst [vmem:[%s677] sm:%s669] %v678
        $region415: #{tpu_custom_call.1} parent=409 // loop_footer
          %s675 = sadd.s32 1, %s671
        $region416: #{tpu_custom_call.1} parent=409 // loop_footer_branch
          %670 = sbr.rel target = $region412
        $region417: #{tpu_custom_call.1} parent=409 // loop_exit
          _
      $region410: #{tpu_custom_call.1} parent=394 // pred_fallthru
        _
    $region395: #{tpu_custom_call.1} parent=1 // pred_fallthru
      _
    // Predicated region
    $region396: #{tpu_custom_call.1} parent=1 // pred_check
      %p645 = pneg %p641
    $region397: #{tpu_custom_call.1} parent=1 // pred_check_branch
      %647 = sbr.rel (%p645) target = $region399
    $region398: #{tpu_custom_call.1} parent=1 // pred_region
      %s648 = sshllo.u32 0, 1
      loop: start=0, step=1, limit=1
      $region400: #{tpu_custom_call.1} parent=398 // loop_pre_header
        _
      $region401: #{tpu_custom_call.1} parent=398 // loop_header
        %s650 = sphi 0, %s654
        %p651 = scmp.ge.s32.totalorder %s650, 1
        %s655 = sphi %s637, %s637
        %s656 = sphi %s638, %s638
      $region402: #{tpu_custom_call.1} parent=398 // loop_header_branch
        %653 = sbr.rel (%p651) target = $region406
      $region403: #{tpu_custom_call.1} parent=398 // loop_body
        %v657 = vld [vmem:[%s655] sm:%s648]
        %658 = vst [vmem:[%s656] sm:%s648] %v657
      $region404: #{tpu_custom_call.1} parent=398 // loop_footer
        %s654 = sadd.s32 1, %s650
      $region405: #{tpu_custom_call.1} parent=398 // loop_footer_branch
        %649 = sbr.rel target = $region401
      $region406: #{tpu_custom_call.1} parent=398 // loop_exit
        _
    $region399: #{tpu_custom_call.1} parent=1 // pred_fallthru
      _
    // Predicated region
    $region418: #{tpu_custom_call.1} parent=1 // pred_check
      _
    $region419: #{tpu_custom_call.1} parent=1 // pred_check_branch
      %682 = sbr.rel (0) target = $region421
    $region420: #{tpu_custom_call.1} parent=1 // pred_region
      %683 = vsyncadd %s639, 16
    $region421: #{tpu_custom_call.1} parent=1 // pred_fallthru
      _
    %s684 = sld [smem:[#allocation4 + $0xe]]
    %s685 = scalar_lea.vmem %s1, %s684
    %s686 = scalar_lea.vmem [#allocation5], 14
    %s687 = scalar_lea.sflag [#allocation2], 14
    %p689 = scmp.lt.u32.totalorder 1, 8
    %p690 = pneg %p689
    // Predicated region
    $region422: #{tpu_custom_call.1} parent=1 // pred_check
      _
    $region423: #{tpu_custom_call.1} parent=1 // pred_check_branch
      %692 = sbr.rel (%p689) target = $region425
    $region424: #{tpu_custom_call.1} parent=1 // pred_region
      %s707 = sand.u32 1, 7
      %p708 = scmp.eq.s32.totalorder %s707, 0
      %p709 = pneg %p708
      // Predicated region
      $region437: #{tpu_custom_call.1} parent=424 // pred_check
        _
      $region438: #{tpu_custom_call.1} parent=424 // pred_check_branch
        %711 = sbr.rel (%p708) target = $region440
      $region439: #{tpu_custom_call.1} parent=424 // pred_region
        %s712 = sand.u32 1, 7
        %s713 = ssub.s32 1, %s712
        %s714 = scalar_lea.vmem %s685, %s713
        %s715 = ssub.s32 1, %s712
        %s716 = scalar_lea.vmem %s686, %s715 [#allocation5]
        %s717 = sshllo.u32 0, %s712
        loop: start=0, step=1, limit=1
        $region441: #{tpu_custom_call.1} parent=439 // loop_pre_header
          _
        $region442: #{tpu_custom_call.1} parent=439 // loop_header
          %s719 = sphi 0, %s723
          %p720 = scmp.ge.s32.totalorder %s719, 1
          %s724 = sphi %s714, %s714
          %s725 = sphi %s716, %s716
        $region443: #{tpu_custom_call.1} parent=439 // loop_header_branch
          %722 = sbr.rel (%p720) target = $region447
        $region444: #{tpu_custom_call.1} parent=439 // loop_body
          %v726 = vld [vmem:[%s724] sm:%s717]
          %727 = vst [vmem:[%s725] sm:%s717] %v726
        $region445: #{tpu_custom_call.1} parent=439 // loop_footer
          %s723 = sadd.s32 1, %s719
        $region446: #{tpu_custom_call.1} parent=439 // loop_footer_branch
          %718 = sbr.rel target = $region442
        $region447: #{tpu_custom_call.1} parent=439 // loop_exit
          _
      $region440: #{tpu_custom_call.1} parent=424 // pred_fallthru
        _
    $region425: #{tpu_custom_call.1} parent=1 // pred_fallthru
      _
    // Predicated region
    $region426: #{tpu_custom_call.1} parent=1 // pred_check
      %p693 = pneg %p689
    $region427: #{tpu_custom_call.1} parent=1 // pred_check_branch
      %695 = sbr.rel (%p693) target = $region429
    $region428: #{tpu_custom_call.1} parent=1 // pred_region
      %s696 = sshllo.u32 0, 1
      loop: start=0, step=1, limit=1
      $region430: #{tpu_custom_call.1} parent=428 // loop_pre_header
        _
      $region431: #{tpu_custom_call.1} parent=428 // loop_header
        %s698 = sphi 0, %s702
        %p699 = scmp.ge.s32.totalorder %s698, 1
        %s703 = sphi %s685, %s685
        %s704 = sphi %s686, %s686
      $region432: #{tpu_custom_call.1} parent=428 // loop_header_branch
        %701 = sbr.rel (%p699) target = $region436
      $region433: #{tpu_custom_call.1} parent=428 // loop_body
        %v705 = vld [vmem:[%s703] sm:%s696]
        %706 = vst [vmem:[%s704] sm:%s696] %v705
      $region434: #{tpu_custom_call.1} parent=428 // loop_footer
        %s702 = sadd.s32 1, %s698
      $region435: #{tpu_custom_call.1} parent=428 // loop_footer_branch
        %697 = sbr.rel target = $region431
      $region436: #{tpu_custom_call.1} parent=428 // loop_exit
        _
    $region429: #{tpu_custom_call.1} parent=1 // pred_fallthru
      _
    // Predicated region
    $region448: #{tpu_custom_call.1} parent=1 // pred_check
      _
    $region449: #{tpu_custom_call.1} parent=1 // pred_check_branch
      %730 = sbr.rel (0) target = $region451
    $region450: #{tpu_custom_call.1} parent=1 // pred_region
      %731 = vsyncadd %s687, 16
    $region451: #{tpu_custom_call.1} parent=1 // pred_fallthru
      _
    %s732 = sld [smem:[#allocation4 + $0xf]]
    %s733 = scalar_lea.vmem %s1, %s732
    %s734 = scalar_lea.vmem [#allocation5], 15
    %s735 = scalar_lea.sflag [#allocation2], 15
    %p737 = scmp.lt.u32.totalorder 1, 8
    %p738 = pneg %p737
    // Predicated region
    $region452: #{tpu_custom_call.1} parent=1 // pred_check
      _
    $region453: #{tpu_custom_call.1} parent=1 // pred_check_branch
      %740 = sbr.rel (%p737) target = $region455
    $region454: #{tpu_custom_call.1} parent=1 // pred_region
      %s755 = sand.u32 1, 7
      %p756 = scmp.eq.s32.totalorder %s755, 0
      %p757 = pneg %p756
      // Predicated region
      $region467: #{tpu_custom_call.1} parent=454 // pred_check
        _
      $region468: #{tpu_custom_call.1} parent=454 // pred_check_branch
        %759 = sbr.rel (%p756) target = $region470
      $region469: #{tpu_custom_call.1} parent=454 // pred_region
        %s760 = sand.u32 1, 7
        %s761 = ssub.s32 1, %s760
        %s762 = scalar_lea.vmem %s733, %s761
        %s763 = ssub.s32 1, %s760
        %s764 = scalar_lea.vmem %s734, %s763 [#allocation5]
        %s765 = sshllo.u32 0, %s760
        loop: start=0, step=1, limit=1
        $region471: #{tpu_custom_call.1} parent=469 // loop_pre_header
          _
        $region472: #{tpu_custom_call.1} parent=469 // loop_header
          %s767 = sphi 0, %s771
          %p768 = scmp.ge.s32.totalorder %s767, 1
          %s772 = sphi %s762, %s762
          %s773 = sphi %s764, %s764
        $region473: #{tpu_custom_call.1} parent=469 // loop_header_branch
          %770 = sbr.rel (%p768) target = $region477
        $region474: #{tpu_custom_call.1} parent=469 // loop_body
          %v774 = vld [vmem:[%s772] sm:%s765]
          %775 = vst [vmem:[%s773] sm:%s765] %v774
        $region475: #{tpu_custom_call.1} parent=469 // loop_footer
          %s771 = sadd.s32 1, %s767
        $region476: #{tpu_custom_call.1} parent=469 // loop_footer_branch
          %766 = sbr.rel target = $region472
        $region477: #{tpu_custom_call.1} parent=469 // loop_exit
          _
      $region470: #{tpu_custom_call.1} parent=454 // pred_fallthru
        _
    $region455: #{tpu_custom_call.1} parent=1 // pred_fallthru
      _
    // Predicated region
    $region456: #{tpu_custom_call.1} parent=1 // pred_check
      %p741 = pneg %p737
    $region457: #{tpu_custom_call.1} parent=1 // pred_check_branch
      %743 = sbr.rel (%p741) target = $region459
    $region458: #{tpu_custom_call.1} parent=1 // pred_region
      %s744 = sshllo.u32 0, 1
      loop: start=0, step=1, limit=1
      $region460: #{tpu_custom_call.1} parent=458 // loop_pre_header
        _
      $region461: #{tpu_custom_call.1} parent=458 // loop_header
        %s746 = sphi 0, %s750
        %p747 = scmp.ge.s32.totalorder %s746, 1
        %s751 = sphi %s733, %s733
        %s752 = sphi %s734, %s734
      $region462: #{tpu_custom_call.1} parent=458 // loop_header_branch
        %749 = sbr.rel (%p747) target = $region466
      $region463: #{tpu_custom_call.1} parent=458 // loop_body
        %v753 = vld [vmem:[%s751] sm:%s744]
        %754 = vst [vmem:[%s752] sm:%s744] %v753
      $region464: #{tpu_custom_call.1} parent=458 // loop_footer
        %s750 = sadd.s32 1, %s746
      $region465: #{tpu_custom_call.1} parent=458 // loop_footer_branch
        %745 = sbr.rel target = $region461
      $region466: #{tpu_custom_call.1} parent=458 // loop_exit
        _
    $region459: #{tpu_custom_call.1} parent=1 // pred_fallthru
      _
    // Predicated region
    $region478: #{tpu_custom_call.1} parent=1 // pred_check
      _
    $region479: #{tpu_custom_call.1} parent=1 // pred_check_branch
      %778 = sbr.rel (0) target = $region481
    $region480: #{tpu_custom_call.1} parent=1 // pred_region
      %779 = vsyncadd %s735, 16
    $region481: #{tpu_custom_call.1} parent=1 // pred_fallthru
      _
    %781 = dma.done [#allocation2], 16
    %783 = dma.done %s63, 16
    %785 = dma.done %s111, 16
    %787 = dma.done %s159, 16
    %789 = dma.done %s207, 16
    %791 = dma.done %s255, 16
    %793 = dma.done %s303, 16
    %795 = dma.done %s351, 16
    %797 = dma.done %s399, 16
    %799 = dma.done %s447, 16
    %801 = dma.done %s495, 16
    %803 = dma.done %s543, 16
    %805 = dma.done %s591, 16
    %807 = dma.done %s639, 16
    %809 = dma.done %s687, 16
    %811 = dma.done %s735, 16
    // Predicated region
    $region482: #{tpu_custom_call.1} parent=1 // pred_check
      _
    $region483: #{tpu_custom_call.1} parent=1 // pred_check_branch
      %813 = sbr.rel (0) target = $region485
    $region484: #{tpu_custom_call.1} parent=1 // pred_region
      %s815 = ssub.s32 256, 256
      %816 = vsyncadd [#allocation6], %s815
      %s817 = sshll.u32 [#allocation5], 4
      %s818 = int_to_ptr.vmem [resolvable:$true] %s817
      %823 = dma.vmem_to_hbm [thread:$0]  %s818, 256, %s2, [#allocation6], 128, 128, 8
    $region485: #{tpu_custom_call.1} parent=1 // pred_fallthru
      _
    // Predicated region
    $region486: #{tpu_custom_call.1} parent=1 // pred_check
      _
    $region487: #{tpu_custom_call.1} parent=1 // pred_check_branch
      %825 = sbr.rel (0) target = $region489
    $region488: #{tpu_custom_call.1} parent=1 // pred_region
      %826 = dma.done [#allocation6], 256
    $region489: #{tpu_custom_call.1} parent=1 // pred_fallthru
      _
    %827 = vsyncpa [#allocation6], 1
  %828 = vsyncmov [#allocation2]
  %s829 = vpop.sfrf %828
  %p830 = scmp.eq.s32.totalorder %s829, 0
  %p831 = pneg %p830
  %833 = shalt.err (%p831)
  %s834 = scalar_lea.sflag [#allocation2], 1
  %835 = vsyncmov %s834
  %s836 = vpop.sfrf %835
  %p837 = scmp.eq.s32.totalorder %s836, 0
  %p838 = pneg %p837
  %840 = shalt.err (%p838)
  %s841 = scalar_lea.sflag [#allocation2], 2
  %842 = vsyncmov %s841
  %s843 = vpop.sfrf %842
  %p844 = scmp.eq.s32.totalorder %s843, 0
  %p845 = pneg %p844
  %847 = shalt.err (%p845)
  %s848 = scalar_lea.sflag [#allocation2], 3
  %849 = vsyncmov %s848
  %s850 = vpop.sfrf %849
  %p851 = scmp.eq.s32.totalorder %s850, 0
  %p852 = pneg %p851
  %854 = shalt.err (%p852)
  %s855 = scalar_lea.sflag [#allocation2], 4
  %856 = vsyncmov %s855
  %s857 = vpop.sfrf %856
  %p858 = scmp.eq.s32.totalorder %s857, 0
  %p859 = pneg %p858
  %861 = shalt.err (%p859)
  %s862 = scalar_lea.sflag [#allocation2], 5
  %863 = vsyncmov %s862
  %s864 = vpop.sfrf %863
  %p865 = scmp.eq.s32.totalorder %s864, 0
  %p866 = pneg %p865
  %868 = shalt.err (%p866)
  %s869 = scalar_lea.sflag [#allocation2], 6
  %870 = vsyncmov %s869
  %s871 = vpop.sfrf %870
  %p872 = scmp.eq.s32.totalorder %s871, 0
  %p873 = pneg %p872
  %875 = shalt.err (%p873)
  %s876 = scalar_lea.sflag [#allocation2], 7
  %877 = vsyncmov %s876
  %s878 = vpop.sfrf %877
  %p879 = scmp.eq.s32.totalorder %s878, 0
  %p880 = pneg %p879
  %882 = shalt.err (%p880)
  %s883 = scalar_lea.sflag [#allocation2], 8
  %884 = vsyncmov %s883
  %s885 = vpop.sfrf %884
  %p886 = scmp.eq.s32.totalorder %s885, 0
  %p887 = pneg %p886
  %889 = shalt.err (%p887)
  %s890 = scalar_lea.sflag [#allocation2], 9
  %891 = vsyncmov %s890
  %s892 = vpop.sfrf %891
  %p893 = scmp.eq.s32.totalorder %s892, 0
  %p894 = pneg %p893
  %896 = shalt.err (%p894)
  %s897 = scalar_lea.sflag [#allocation2], 10
  %898 = vsyncmov %s897
  %s899 = vpop.sfrf %898
  %p900 = scmp.eq.s32.totalorder %s899, 0
  %p901 = pneg %p900
  %903 = shalt.err (%p901)
  %s904 = scalar_lea.sflag [#allocation2], 11
  %905 = vsyncmov %s904
  %s906 = vpop.sfrf %905
  %p907 = scmp.eq.s32.totalorder %s906, 0
  %p908 = pneg %p907
  %910 = shalt.err (%p908)
  %s911 = scalar_lea.sflag [#allocation2], 12
  %912 = vsyncmov %s911
  %s913 = vpop.sfrf %912
  %p914 = scmp.eq.s32.totalorder %s913, 0
  %p915 = pneg %p914
  %917 = shalt.err (%p915)
  %s918 = scalar_lea.sflag [#allocation2], 13
  %919 = vsyncmov %s918
  %s920 = vpop.sfrf %919
  %p921 = scmp.eq.s32.totalorder %s920, 0
  %p922 = pneg %p921
  %924 = shalt.err (%p922)
  %s925 = scalar_lea.sflag [#allocation2], 14
  %926 = vsyncmov %s925
  %s927 = vpop.sfrf %926
  %p928 = scmp.eq.s32.totalorder %s927, 0
  %p929 = pneg %p928
  %931 = shalt.err (%p929)
  %s932 = scalar_lea.sflag [#allocation2], 15
  %933 = vsyncmov %s932
  %s934 = vpop.sfrf %933
  %p935 = scmp.eq.s32.totalorder %s934, 0
  %p936 = pneg %p935
  %938 = shalt.err (%p936)

</llo_original>
